<compile_context>
chip_gen: v7x
topology: tpu7x:2x2x1
jax: 0.10.0
libtpu: 0.0.40
codegen_flags: <defaults>
</compile_context>

<pallas_src>
import functools

import jax
import jax.numpy as jnp
from jax import lax
from jax.experimental import pallas as pl
from jax.experimental.pallas import tpu as pltpu


# ---------------------------------------------------------------------------
# Pallas kernel: one conv layer (kernel (K,1), stride (S,1)) + bias + LeakyReLU
# ---------------------------------------------------------------------------
def _conv_kernel(x_ref, w_ref, b_ref, o_ref, *, apply_act, neg_slope,
                 compute_dtype):
    # x_ref: (Hb, S*C_in)   padded, stride-split input row n = (b, w)
    # w_ref: (D, S*C_in, C_out) packed taps;  b_ref: (1, C_out)
    # o_ref: (H_out, C_out)
    d_taps, gcin, c_out = w_ref.shape
    h_out = o_ref.shape[0]

    acc = jnp.zeros((h_out, c_out), jnp.float32)
    if gcin <= 8:
        # First layer (C_in == 1): contraction width is only S -> do it on the
        # VPU as broadcast multiply-adds instead of a 1/128-filled MXU matmul.
        for d in range(d_taps):                      # static, <= 2
            xs = x_ref[pl.ds(d, h_out), :].astype(jnp.float32)   # (H_out, S)
            wd = w_ref[d].astype(jnp.float32)                    # (S, C_out)
            for p in range(gcin):                    # static, <= 3
                acc = acc + xs[:, p:p + 1] * wd[p:p + 1, :]
    else:
        # D big matmuls; contraction width S*C_in (96 for the stride-3 layers).
        for d in range(d_taps):                      # static, <= 5
            xs = x_ref[pl.ds(d, h_out), :]           # (H_out, S*C_in)
            acc = acc + jnp.dot(xs.astype(compute_dtype),
                                w_ref[d].astype(compute_dtype),
                                preferred_element_type=jnp.float32)

    y = acc + b_ref[...]                             # (H_out, C_out) + (1, C_out)
    if apply_act:
        y = jnp.where(y >= 0.0, y, neg_slope * y)
    o_ref[...] = y.astype(o_ref.dtype)               # single whole-tile store


# ---------------------------------------------------------------------------
# Host-side helpers: padding / stride-split layout and weight packing
# ---------------------------------------------------------------------------
def _prep_input(x, kernel_size, stride, pad):
    """Zero-pad along H and fold the stride into the lane dim (free reshape)."""
    n, h, c = x.shape
    h_out = (h + 2 * pad - kernel_size) // stride + 1
    flat_len = max(pad + h, (h_out - 1) * stride + kernel_size)
    hb = -(-flat_len // stride)
    right = hb * stride - pad - h
    # TODO(synk): this jnp.pad is one extra HBM round-trip per layer; folding
    # the edge handling into the kernel (masked taps) would remove it.
    xp = jnp.pad(x, ((0, 0), (pad, right), (0, 0)))
    return xp.reshape(n, hb, stride * c), h_out


def _pack_weights(w_kio, stride):
    """(K, C_in, C_out) -> (ceil(K/S), S*C_in, C_out) matching the split input."""
    k, cin, cout = w_kio.shape
    d_taps = -(-k // stride)
    wp = jnp.zeros((d_taps, stride * cin, cout), w_kio.dtype)
    for kh in range(k):
        d, p = divmod(kh, stride)
        wp = wp.at[d, p * cin:(p + 1) * cin, :].set(w_kio[kh])
    return wp


def conv_layer(x, wp, bias, *, kernel_size, stride, pad, apply_act,
               neg_slope=0.2, compute_dtype=jnp.bfloat16):
    """x: (N, H, C_in) f32;  wp: packed (D, S*C_in, C_out);  bias: (C_out,)."""
    n, h, c_in = x.shape
    d_taps, gcin, c_out = wp.shape
    assert gcin == stride * c_in
    xs, h_out = _prep_input(x, kernel_size, stride, pad)
    hb = xs.shape[1]

    kern = functools.partial(_conv_kernel, apply_act=apply_act,
                             neg_slope=neg_slope, compute_dtype=compute_dtype)
    return pl.pallas_call(
        kern,
        out_shape=jax.ShapeDtypeStruct((n, h_out, c_out), jnp.float32),
        grid=(n,),
        in_specs=[
            pl.BlockSpec((None, hb, gcin), lambda i: (i, 0, 0)),
            pl.BlockSpec((d_taps, gcin, c_out), lambda i: (0, 0, 0)),
            pl.BlockSpec((1, c_out), lambda i: (0, 0)),
        ],
        out_specs=pl.BlockSpec((None, h_out, c_out), lambda i: (i, 0, 0)),
        compiler_params=pltpu.CompilerParams(
            dimension_semantics=("parallel",),   # 2x on v7x (2 TCs); no-op v5e/v6e
            vmem_limit_bytes=48 * 1024 * 1024,   # stays inside v7x's 64 MiB VMEM
        ),
    )(xs, wp, bias.reshape(1, c_out))


# ---------------------------------------------------------------------------
# DiscriminatorP forward (Pallas for every conv / activation, glue in JAX)
# ---------------------------------------------------------------------------
def _to_nchw(xk, b, period):
    # (B*W, H, C) -> (B, C, H, W)
    n, h, c = xk.shape
    return xk.reshape(b, period, h, c).transpose(0, 3, 2, 1)


def discriminator_p_forward(x, params, period, neg_slope=0.2,
                            compute_dtype=jnp.bfloat16):
    """x: (B, C=1, T) float32.  Returns (flat_logits, fmap_list) like PyTorch."""
    b, c, t = x.shape
    if t % period != 0:
        n_pad = period - t % period
        x = jnp.pad(x, ((0, 0), (0, 0), (0, n_pad)), mode="reflect")
        t = t + n_pad
    h = t // period
    # NCHW (B, C, H, W=period) -> rows (N=B*W, H, C): channels on the lane axis.
    xk = x.reshape(b, c, h, period).transpose(0, 3, 2, 1).reshape(b * period, h, c)

    fmap = []
    for (wp, bias, k, s, p) in params["convs"]:
        xk = conv_layer(xk, wp, bias, kernel_size=k, stride=s, pad=p,
                        apply_act=True, neg_slope=neg_slope,
                        compute_dtype=compute_dtype)
        # TODO(synk): NCHW fmap transpose is XLA glue (one HBM pass per layer);
        # a downstream loss could consume the (N, H, C) layout directly.
        fmap.append(_to_nchw(xk, b, period))

    wp, bias, k, s, p = params["conv_post"]
    y = conv_layer(xk, wp, bias, kernel_size=k, stride=s, pad=p,
                   apply_act=False, compute_dtype=compute_dtype)
    out_nchw = _to_nchw(y, b, period)
    fmap.append(out_nchw)
    flat = out_nchw.reshape(b, -1)                   # flatten dims 1..-1
    return flat, fmap


# ---------------------------------------------------------------------------
# Deterministic parameter construction (shapes from the module's __init__)
# ---------------------------------------------------------------------------
def make_params(key, kernel_size=5, stride=3):
    # TODO(synk): weight_norm reparameterization is an init-time identity here;
    # weights are sampled directly (no .pt checkpoint is loaded).
    pad = (kernel_size - 1) // 2                     # get_padding(5, 1) == 2
    layer_defs = [
        (1, 32, kernel_size, stride, pad),
        (32, 32, kernel_size, stride, pad),
        (32, 32, kernel_size, stride, pad),
        (32, 32, kernel_size, stride, pad),
        (32, 32, kernel_size, 1, pad),
    ]
    post_def = (32, 1, 3, 1, 1)

    params_k = {"convs": []}     # packed weights (D, S*C_in, C_out)
    params_r = {"convs": []}     # reference-layout weights (O, I, K, 1)
    keys = jax.random.split(key, 2 * (len(layer_defs) + 1))
    ki = 0
    for (cin, cout, k, s, p) in layer_defs:
        w = jax.random.normal(keys[ki], (cout, cin, k, 1), jnp.float32) * 0.1
        bb = jax.random.normal(keys[ki + 1], (cout,), jnp.float32) * 0.01
        ki += 2
        w_kio = jnp.transpose(w[..., 0], (2, 1, 0))  # (K, C_in, C_out)
        params_k["convs"].append((_pack_weights(w_kio, s), bb, k, s, p))
        params_r["convs"].append((w, bb, s, p))
    cin, cout, k, s, p = post_def
    w = jax.random.normal(keys[ki], (cout, cin, k, 1), jnp.float32) * 0.1
    bb = jax.random.normal(keys[ki + 1], (cout,), jnp.float32) * 0.01
    w_kio = jnp.transpose(w[..., 0], (2, 1, 0))
    params_k["conv_post"] = (_pack_weights(w_kio, s), bb, k, s, p)
    params_r["conv_post"] = (w, bb, s, p)
    return params_k, params_r


# ---------------------------------------------------------------------------
# Pure-JAX reference (lax.conv, HIGHEST precision) for correctness checking
# ---------------------------------------------------------------------------
def reference_forward(x, params_r, period, neg_slope=0.2):
    b, c, t = x.shape
    if t % period != 0:
        n_pad = period - t % period
        x = jnp.pad(x, ((0, 0), (0, 0), (0, n_pad)), mode="reflect")
        t = t + n_pad
    x = x.reshape(b, c, t // period, period)
    fmap = []

    def conv(x, w, bias, s, p):
        y = lax.conv_general_dilated(
            x, w, window_strides=(s, 1), padding=((p, p), (0, 0)),
            dimension_numbers=("NCHW", "OIHW", "NCHW"),
            precision=lax.Precision.HIGHEST)
        return y + bias.reshape(1, -1, 1, 1)

    for (w, bias, s, p) in params_r["convs"]:
        x = conv(x, w, bias, s, p)
        x = jnp.where(x >= 0, x, neg_slope * x)
        fmap.append(x)
    w, bias, s, p = params_r["conv_post"]
    x = conv(x, w, bias, s, p)
    fmap.append(x)
    return x.reshape(b, -1), fmap


if __name__ == "__main__":
    key = jax.random.PRNGKey(0)
    pkey, xkey = jax.random.split(key)

    period = 3
    B, C, T = 2, 1, 311           # T not divisible by period -> reflect pad path
    x = jax.random.normal(xkey, (B, C, T), jnp.float32)

    params_k, params_r = make_params(pkey)

    fwd = jax.jit(lambda inp: discriminator_p_forward(inp, params_k, period))
    flat, fmap = fwd(x)
    flat = jax.block_until_ready(flat)
    fmap = [jax.block_until_ready(f) for f in fmap]

    # sanity check vs. pure-JAX reference (bf16 MXU operands vs. f32 HIGHEST)
    ref_flat, ref_fmap = reference_forward(x, params_r, period)
    assert flat.shape == ref_flat.shape, (flat.shape, ref_flat.shape)
    assert all(a.shape == r.shape for a, r in zip(fmap, ref_fmap))
    assert jnp.allclose(flat, ref_flat, atol=2e-2, rtol=2e-2)
    for a, r in zip(fmap, ref_fmap):
        assert jnp.allclose(a, r, atol=2e-2, rtol=2e-2)

    print("KERNEL_OK")
</pallas_src>

<mosaic_0001>
module attributes {stable_mosaic.version = 11 : i64} {
  func.func @_conv_kernel(%arg0: i32, %arg1: memref<1x36x3xf32, #tpu.memory_space<vmem>>, %arg2: memref<2x3x32xf32, #tpu.memory_space<vmem>>, %arg3: memref<1x32xf32, #tpu.memory_space<vmem>>, %arg4: memref<1x35x32xf32, #tpu.memory_space<vmem>>) attributes {dimension_semantics = [#tpu.dimension_semantics<parallel>], iteration_bounds = array<i64: 6>, scalar_prefetch = 0 : i64, scratch_operands = 0 : i64, tpu.core_type = #tpu.core_type<tc>, window_params = [{transform_indices = @transform_0, window_bounds = array<i64: 1, 36, 3>}, {pipeline_mode = #tpu.pipeline_mode<synchronous>, transform_indices = @transform_1, window_bounds = array<i64: 2, 3, 32>}, {pipeline_mode = #tpu.pipeline_mode<synchronous>, transform_indices = @transform_2, window_bounds = array<i64: 1, 32>}, {transform_indices = @transform_3, window_bounds = array<i64: 1, 35, 32>}]} {
    %cst = arith.constant 0.000000e+00 : f32
    %0 = vector.broadcast %cst : f32 to vector<35x32xf32>
    %c0 = arith.constant 0 : index
    %c0_0 = arith.constant 0 : index
    %c0_1 = arith.constant 0 : index
    %1 = vector.load %arg1[%c0, %c0_0, %c0_1] : memref<1x36x3xf32, #tpu.memory_space<vmem>>, vector<1x35x3xf32>
    %2 = vector.shape_cast %1 : vector<1x35x3xf32> to vector<35x3xf32>
    %c0_2 = arith.constant 0 : index
    %c0_3 = arith.constant 0 : index
    %c0_4 = arith.constant 0 : index
    %3 = vector.load %arg2[%c0_2, %c0_3, %c0_4] : memref<2x3x32xf32, #tpu.memory_space<vmem>>, vector<1x3x32xf32>
    %4 = vector.shape_cast %3 : vector<1x3x32xf32> to vector<3x32xf32>
    %5 = vector.extract_strided_slice %2 {offsets = [0, 0], sizes = [35, 1], strides = [1, 1]} : vector<35x3xf32> to vector<35x1xf32>
    %6 = vector.extract_strided_slice %4 {offsets = [0, 0], sizes = [1, 32], strides = [1, 1]} : vector<3x32xf32> to vector<1x32xf32>
    %7 = vector.broadcast %5 : vector<35x1xf32> to vector<35x32xf32>
    %8 = vector.broadcast %6 : vector<1x32xf32> to vector<35x32xf32>
    %9 = arith.mulf %7, %8 : vector<35x32xf32>
    %10 = arith.addf %0, %9 : vector<35x32xf32>
    %11 = vector.extract_strided_slice %2 {offsets = [0, 1], sizes = [35, 1], strides = [1, 1]} : vector<35x3xf32> to vector<35x1xf32>
    %12 = vector.extract_strided_slice %4 {offsets = [1, 0], sizes = [1, 32], strides = [1, 1]} : vector<3x32xf32> to vector<1x32xf32>
    %13 = vector.broadcast %11 : vector<35x1xf32> to vector<35x32xf32>
    %14 = vector.broadcast %12 : vector<1x32xf32> to vector<35x32xf32>
    %15 = arith.mulf %13, %14 : vector<35x32xf32>
    %16 = arith.addf %10, %15 : vector<35x32xf32>
    %17 = vector.extract_strided_slice %2 {offsets = [0, 2], sizes = [35, 1], strides = [1, 1]} : vector<35x3xf32> to vector<35x1xf32>
    %18 = vector.extract_strided_slice %4 {offsets = [2, 0], sizes = [1, 32], strides = [1, 1]} : vector<3x32xf32> to vector<1x32xf32>
    %19 = vector.broadcast %17 : vector<35x1xf32> to vector<35x32xf32>
    %20 = vector.broadcast %18 : vector<1x32xf32> to vector<35x32xf32>
    %21 = arith.mulf %19, %20 : vector<35x32xf32>
    %22 = arith.addf %16, %21 : vector<35x32xf32>
    %c0_5 = arith.constant 0 : index
    %c1 = arith.constant 1 : index
    %c0_6 = arith.constant 0 : index
    %23 = vector.load %arg1[%c0_5, %c1, %c0_6] : memref<1x36x3xf32, #tpu.memory_space<vmem>>, vector<1x35x3xf32>
    %24 = vector.shape_cast %23 : vector<1x35x3xf32> to vector<35x3xf32>
    %c1_7 = arith.constant 1 : index
    %c0_8 = arith.constant 0 : index
    %c0_9 = arith.constant 0 : index
    %25 = vector.load %arg2[%c1_7, %c0_8, %c0_9] : memref<2x3x32xf32, #tpu.memory_space<vmem>>, vector<1x3x32xf32>
    %26 = vector.shape_cast %25 : vector<1x3x32xf32> to vector<3x32xf32>
    %27 = vector.extract_strided_slice %24 {offsets = [0, 0], sizes = [35, 1], strides = [1, 1]} : vector<35x3xf32> to vector<35x1xf32>
    %28 = vector.extract_strided_slice %26 {offsets = [0, 0], sizes = [1, 32], strides = [1, 1]} : vector<3x32xf32> to vector<1x32xf32>
    %29 = vector.broadcast %27 : vector<35x1xf32> to vector<35x32xf32>
    %30 = vector.broadcast %28 : vector<1x32xf32> to vector<35x32xf32>
    %31 = arith.mulf %29, %30 : vector<35x32xf32>
    %32 = arith.addf %22, %31 : vector<35x32xf32>
    %33 = vector.extract_strided_slice %24 {offsets = [0, 1], sizes = [35, 1], strides = [1, 1]} : vector<35x3xf32> to vector<35x1xf32>
    %34 = vector.extract_strided_slice %26 {offsets = [1, 0], sizes = [1, 32], strides = [1, 1]} : vector<3x32xf32> to vector<1x32xf32>
    %35 = vector.broadcast %33 : vector<35x1xf32> to vector<35x32xf32>
    %36 = vector.broadcast %34 : vector<1x32xf32> to vector<35x32xf32>
    %37 = arith.mulf %35, %36 : vector<35x32xf32>
    %38 = arith.addf %32, %37 : vector<35x32xf32>
    %39 = vector.extract_strided_slice %24 {offsets = [0, 2], sizes = [35, 1], strides = [1, 1]} : vector<35x3xf32> to vector<35x1xf32>
    %40 = vector.extract_strided_slice %26 {offsets = [2, 0], sizes = [1, 32], strides = [1, 1]} : vector<3x32xf32> to vector<1x32xf32>
    %41 = vector.broadcast %39 : vector<35x1xf32> to vector<35x32xf32>
    %42 = vector.broadcast %40 : vector<1x32xf32> to vector<35x32xf32>
    %43 = arith.mulf %41, %42 : vector<35x32xf32>
    %44 = arith.addf %38, %43 : vector<35x32xf32>
    %c0_10 = arith.constant 0 : index
    %c0_11 = arith.constant 0 : index
    %45 = vector.load %arg3[%c0_10, %c0_11] : memref<1x32xf32, #tpu.memory_space<vmem>>, vector<1x32xf32>
    %46 = vector.broadcast %45 : vector<1x32xf32> to vector<35x32xf32>
    %47 = arith.addf %44, %46 : vector<35x32xf32>
    %cst_12 = arith.constant 0.000000e+00 : f32
    %48 = vector.broadcast %cst_12 : f32 to vector<35x32xf32>
    %49 = arith.cmpf oge, %47, %48 : vector<35x32xf32>
    %cst_13 = arith.constant 2.000000e-01 : f32
    %50 = vector.broadcast %cst_13 : f32 to vector<35x32xf32>
    %51 = arith.mulf %50, %47 : vector<35x32xf32>
    %52 = arith.select %49, %47, %51 : vector<35x32xi1>, vector<35x32xf32>
    %c0_14 = arith.constant 0 : index
    %c0_15 = arith.constant 0 : index
    %c0_16 = arith.constant 0 : index
    %53 = vector.load %arg4[%c0_14, %c0_15, %c0_16] : memref<1x35x32xf32, #tpu.memory_space<vmem>>, vector<1x35x32xf32>
    %54 = vector.shape_cast %53 : vector<1x35x32xf32> to vector<35x32xf32>
    %55 = vector.shape_cast %52 : vector<35x32xf32> to vector<1x35x32xf32>
    tpu.vector_store %arg4[%c0_14, %c0_15, %c0_16], %55 {strides = array<i32>} : memref<1x35x32xf32, #tpu.memory_space<vmem>>, vector<1x35x32xf32>,
    return
  }
  func.func @transform_0(%arg0: i32) -> (i32, i32, i32) {
    %c0_i32 = arith.constant 0 : i32
    %c0_i32_0 = arith.constant 0 : i32
    %c0_i32_1 = arith.constant 0 : i32
    return %arg0, %c0_i32, %c0_i32_0 : i32, i32, i32
  }
  func.func @transform_1(%arg0: i32) -> (i32, i32, i32) {
    %c0_i32 = arith.constant 0 : i32
    %c0_i32_0 = arith.constant 0 : i32
    %c0_i32_1 = arith.constant 0 : i32
    %c0_i32_2 = arith.constant 0 : i32
    return %c0_i32, %c0_i32_0, %c0_i32_1 : i32, i32, i32
  }
  func.func @transform_2(%arg0: i32) -> (i32, i32) {
    %c0_i32 = arith.constant 0 : i32
    %c0_i32_0 = arith.constant 0 : i32
    %c0_i32_1 = arith.constant 0 : i32
    return %c0_i32, %c0_i32_0 : i32, i32
  }
  func.func @transform_3(%arg0: i32) -> (i32, i32, i32) {
    %c0_i32 = arith.constant 0 : i32
    %c0_i32_0 = arith.constant 0 : i32
    %c0_i32_1 = arith.constant 0 : i32
    return %arg0, %c0_i32, %c0_i32_0 : i32, i32, i32
  }
}

module attributes {stable_mosaic.version = 11 : i64} {
  func.func @_conv_kernel(%arg0: i32, %arg1: memref<1x13x96xf32, #tpu.memory_space<vmem>>, %arg2: memref<2x96x32xf32, #tpu.memory_space<vmem>>, %arg3: memref<1x32xf32, #tpu.memory_space<vmem>>, %arg4: memref<1x12x32xf32, #tpu.memory_space<vmem>>) attributes {dimension_semantics = [#tpu.dimension_semantics<parallel>], iteration_bounds = array<i64: 6>, scalar_prefetch = 0 : i64, scratch_operands = 0 : i64, tpu.core_type = #tpu.core_type<tc>, window_params = [{transform_indices = @transform_0, window_bounds = array<i64: 1, 13, 96>}, {pipeline_mode = #tpu.pipeline_mode<synchronous>, transform_indices = @transform_1, window_bounds = array<i64: 2, 96, 32>}, {pipeline_mode = #tpu.pipeline_mode<synchronous>, transform_indices = @transform_2, window_bounds = array<i64: 1, 32>}, {transform_indices = @transform_3, window_bounds = array<i64: 1, 12, 32>}]} {
    %cst = arith.constant 0.000000e+00 : f32
    %0 = vector.broadcast %cst : f32 to vector<12x32xf32>
    %c0 = arith.constant 0 : index
    %c0_0 = arith.constant 0 : index
    %c0_1 = arith.constant 0 : index
    %1 = vector.load %arg1[%c0, %c0_0, %c0_1] : memref<1x13x96xf32, #tpu.memory_space<vmem>>, vector<1x12x96xf32>
    %2 = vector.shape_cast %1 : vector<1x12x96xf32> to vector<12x96xf32>
    %3 = arith.truncf %2 : vector<12x96xf32> to vector<12x96xbf16>
    %c0_2 = arith.constant 0 : index
    %c0_3 = arith.constant 0 : index
    %c0_4 = arith.constant 0 : index
    %4 = vector.load %arg2[%c0_2, %c0_3, %c0_4] : memref<2x96x32xf32, #tpu.memory_space<vmem>>, vector<1x96x32xf32>
    %5 = vector.shape_cast %4 : vector<1x96x32xf32> to vector<96x32xf32>
    %6 = arith.truncf %5 : vector<96x32xf32> to vector<96x32xbf16>
    %cst_5 = arith.constant dense<0.000000e+00> : vector<12x32xf32>
    %7 = tpu.matmul %3, %6, %cst_5 {dimension_numbers = #tpu.dot_dimension_numbers<[1], [0], [0], [1], [0, 0, 1, 1], [], []>} : vector<12x96xbf16>, vector<96x32xbf16>, vector<12x32xf32> -> vector<12x32xf32>
    %8 = arith.addf %0, %7 : vector<12x32xf32>
    %c0_6 = arith.constant 0 : index
    %c1 = arith.constant 1 : index
    %c0_7 = arith.constant 0 : index
    %9 = vector.load %arg1[%c0_6, %c1, %c0_7] : memref<1x13x96xf32, #tpu.memory_space<vmem>>, vector<1x12x96xf32>
    %10 = vector.shape_cast %9 : vector<1x12x96xf32> to vector<12x96xf32>
    %11 = arith.truncf %10 : vector<12x96xf32> to vector<12x96xbf16>
    %c1_8 = arith.constant 1 : index
    %c0_9 = arith.constant 0 : index
    %c0_10 = arith.constant 0 : index
    %12 = vector.load %arg2[%c1_8, %c0_9, %c0_10] : memref<2x96x32xf32, #tpu.memory_space<vmem>>, vector<1x96x32xf32>
    %13 = vector.shape_cast %12 : vector<1x96x32xf32> to vector<96x32xf32>
    %14 = arith.truncf %13 : vector<96x32xf32> to vector<96x32xbf16>
    %cst_11 = arith.constant dense<0.000000e+00> : vector<12x32xf32>
    %15 = tpu.matmul %11, %14, %cst_11 {dimension_numbers = #tpu.dot_dimension_numbers<[1], [0], [0], [1], [0, 0, 1, 1], [], []>} : vector<12x96xbf16>, vector<96x32xbf16>, vector<12x32xf32> -> vector<12x32xf32>
    %16 = arith.addf %8, %15 : vector<12x32xf32>
    %c0_12 = arith.constant 0 : index
    %c0_13 = arith.constant 0 : index
    %17 = vector.load %arg3[%c0_12, %c0_13] : memref<1x32xf32, #tpu.memory_space<vmem>>, vector<1x32xf32>
    %18 = vector.broadcast %17 : vector<1x32xf32> to vector<12x32xf32>
    %19 = arith.addf %16, %18 : vector<12x32xf32>
    %cst_14 = arith.constant 0.000000e+00 : f32
    %20 = vector.broadcast %cst_14 : f32 to vector<12x32xf32>
    %21 = arith.cmpf oge, %19, %20 : vector<12x32xf32>
    %cst_15 = arith.constant 2.000000e-01 : f32
    %22 = vector.broadcast %cst_15 : f32 to vector<12x32xf32>
    %23 = arith.mulf %22, %19 : vector<12x32xf32>
    %24 = arith.select %21, %19, %23 : vector<12x32xi1>, vector<12x32xf32>
    %c0_16 = arith.constant 0 : index
    %c0_17 = arith.constant 0 : index
    %c0_18 = arith.constant 0 : index
    %25 = vector.load %arg4[%c0_16, %c0_17, %c0_18] : memref<1x12x32xf32, #tpu.memory_space<vmem>>, vector<1x12x32xf32>
    %26 = vector.shape_cast %25 : vector<1x12x32xf32> to vector<12x32xf32>
    %27 = vector.shape_cast %24 : vector<12x32xf32> to vector<1x12x32xf32>
    tpu.vector_store %arg4[%c0_16, %c0_17, %c0_18], %27 {strides = array<i32>} : memref<1x12x32xf32, #tpu.memory_space<vmem>>, vector<1x12x32xf32>,
    return
  }
  func.func @transform_0(%arg0: i32) -> (i32, i32, i32) {
    %c0_i32 = arith.constant 0 : i32
    %c0_i32_0 = arith.constant 0 : i32
    %c0_i32_1 = arith.constant 0 : i32
    return %arg0, %c0_i32, %c0_i32_0 : i32, i32, i32
  }
  func.func @transform_1(%arg0: i32) -> (i32, i32, i32) {
    %c0_i32 = arith.constant 0 : i32
    %c0_i32_0 = arith.constant 0 : i32
    %c0_i32_1 = arith.constant 0 : i32
    %c0_i32_2 = arith.constant 0 : i32
    return %c0_i32, %c0_i32_0, %c0_i32_1 : i32, i32, i32
  }
  func.func @transform_2(%arg0: i32) -> (i32, i32) {
    %c0_i32 = arith.constant 0 : i32
    %c0_i32_0 = arith.constant 0 : i32
    %c0_i32_1 = arith.constant 0 : i32
    return %c0_i32, %c0_i32_0 : i32, i32
  }
  func.func @transform_3(%arg0: i32) -> (i32, i32, i32) {
    %c0_i32 = arith.constant 0 : i32
    %c0_i32_0 = arith.constant 0 : i32
    %c0_i32_1 = arith.constant 0 : i32
    return %arg0, %c0_i32, %c0_i32_0 : i32, i32, i32
  }
}

module attributes {stable_mosaic.version = 11 : i64} {
  func.func @_conv_kernel(%arg0: i32, %arg1: memref<1x5x96xf32, #tpu.memory_space<vmem>>, %arg2: memref<2x96x32xf32, #tpu.memory_space<vmem>>, %arg3: memref<1x32xf32, #tpu.memory_space<vmem>>, %arg4: memref<1x4x32xf32, #tpu.memory_space<vmem>>) attributes {dimension_semantics = [#tpu.dimension_semantics<parallel>], iteration_bounds = array<i64: 6>, scalar_prefetch = 0 : i64, scratch_operands = 0 : i64, tpu.core_type = #tpu.core_type<tc>, window_params = [{transform_indices = @transform_0, window_bounds = array<i64: 1, 5, 96>}, {pipeline_mode = #tpu.pipeline_mode<synchronous>, transform_indices = @transform_1, window_bounds = array<i64: 2, 96, 32>}, {pipeline_mode = #tpu.pipeline_mode<synchronous>, transform_indices = @transform_2, window_bounds = array<i64: 1, 32>}, {transform_indices = @transform_3, window_bounds = array<i64: 1, 4, 32>}]} {
    %cst = arith.constant 0.000000e+00 : f32
    %0 = vector.broadcast %cst : f32 to vector<4x32xf32>
    %c0 = arith.constant 0 : index
    %c0_0 = arith.constant 0 : index
    %c0_1 = arith.constant 0 : index
    %1 = vector.load %arg1[%c0, %c0_0, %c0_1] : memref<1x5x96xf32, #tpu.memory_space<vmem>>, vector<1x4x96xf32>
    %2 = vector.shape_cast %1 : vector<1x4x96xf32> to vector<4x96xf32>
    %3 = arith.truncf %2 : vector<4x96xf32> to vector<4x96xbf16>
    %c0_2 = arith.constant 0 : index
    %c0_3 = arith.constant 0 : index
    %c0_4 = arith.constant 0 : index
    %4 = vector.load %arg2[%c0_2, %c0_3, %c0_4] : memref<2x96x32xf32, #tpu.memory_space<vmem>>, vector<1x96x32xf32>
    %5 = vector.shape_cast %4 : vector<1x96x32xf32> to vector<96x32xf32>
    %6 = arith.truncf %5 : vector<96x32xf32> to vector<96x32xbf16>
    %cst_5 = arith.constant dense<0.000000e+00> : vector<4x32xf32>
    %7 = tpu.matmul %3, %6, %cst_5 {dimension_numbers = #tpu.dot_dimension_numbers<[1], [0], [0], [1], [0, 0, 1, 1], [], []>} : vector<4x96xbf16>, vector<96x32xbf16>, vector<4x32xf32> -> vector<4x32xf32>
    %8 = arith.addf %0, %7 : vector<4x32xf32>
    %c0_6 = arith.constant 0 : index
    %c1 = arith.constant 1 : index
    %c0_7 = arith.constant 0 : index
    %9 = vector.load %arg1[%c0_6, %c1, %c0_7] : memref<1x5x96xf32, #tpu.memory_space<vmem>>, vector<1x4x96xf32>
    %10 = vector.shape_cast %9 : vector<1x4x96xf32> to vector<4x96xf32>
    %11 = arith.truncf %10 : vector<4x96xf32> to vector<4x96xbf16>
    %c1_8 = arith.constant 1 : index
    %c0_9 = arith.constant 0 : index
    %c0_10 = arith.constant 0 : index
    %12 = vector.load %arg2[%c1_8, %c0_9, %c0_10] : memref<2x96x32xf32, #tpu.memory_space<vmem>>, vector<1x96x32xf32>
    %13 = vector.shape_cast %12 : vector<1x96x32xf32> to vector<96x32xf32>
    %14 = arith.truncf %13 : vector<96x32xf32> to vector<96x32xbf16>
    %cst_11 = arith.constant dense<0.000000e+00> : vector<4x32xf32>
    %15 = tpu.matmul %11, %14, %cst_11 {dimension_numbers = #tpu.dot_dimension_numbers<[1], [0], [0], [1], [0, 0, 1, 1], [], []>} : vector<4x96xbf16>, vector<96x32xbf16>, vector<4x32xf32> -> vector<4x32xf32>
    %16 = arith.addf %8, %15 : vector<4x32xf32>
    %c0_12 = arith.constant 0 : index
    %c0_13 = arith.constant 0 : index
    %17 = vector.load %arg3[%c0_12, %c0_13] : memref<1x32xf32, #tpu.memory_space<vmem>>, vector<1x32xf32>
    %18 = vector.broadcast %17 : vector<1x32xf32> to vector<4x32xf32>
    %19 = arith.addf %16, %18 : vector<4x32xf32>
    %cst_14 = arith.constant 0.000000e+00 : f32
    %20 = vector.broadcast %cst_14 : f32 to vector<4x32xf32>
    %21 = arith.cmpf oge, %19, %20 : vector<4x32xf32>
    %cst_15 = arith.constant 2.000000e-01 : f32
    %22 = vector.broadcast %cst_15 : f32 to vector<4x32xf32>
    %23 = arith.mulf %22, %19 : vector<4x32xf32>
    %24 = arith.select %21, %19, %23 : vector<4x32xi1>, vector<4x32xf32>
    %c0_16 = arith.constant 0 : index
    %c0_17 = arith.constant 0 : index
    %c0_18 = arith.constant 0 : index
    %25 = vector.load %arg4[%c0_16, %c0_17, %c0_18] : memref<1x4x32xf32, #tpu.memory_space<vmem>>, vector<1x4x32xf32>
    %26 = vector.shape_cast %25 : vector<1x4x32xf32> to vector<4x32xf32>
    %27 = vector.shape_cast %24 : vector<4x32xf32> to vector<1x4x32xf32>
    tpu.vector_store %arg4[%c0_16, %c0_17, %c0_18], %27 {strides = array<i32>} : memref<1x4x32xf32, #tpu.memory_space<vmem>>, vector<1x4x32xf32>,
    return
  }
  func.func @transform_0(%arg0: i32) -> (i32, i32, i32) {
    %c0_i32 = arith.constant 0 : i32
    %c0_i32_0 = arith.constant 0 : i32
    %c0_i32_1 = arith.constant 0 : i32
    return %arg0, %c0_i32, %c0_i32_0 : i32, i32, i32
  }
  func.func @transform_1(%arg0: i32) -> (i32, i32, i32) {
    %c0_i32 = arith.constant 0 : i32
    %c0_i32_0 = arith.constant 0 : i32
    %c0_i32_1 = arith.constant 0 : i32
    %c0_i32_2 = arith.constant 0 : i32
    return %c0_i32, %c0_i32_0, %c0_i32_1 : i32, i32, i32
  }
  func.func @transform_2(%arg0: i32) -> (i32, i32) {
    %c0_i32 = arith.constant 0 : i32
    %c0_i32_0 = arith.constant 0 : i32
    %c0_i32_1 = arith.constant 0 : i32
    return %c0_i32, %c0_i32_0 : i32, i32
  }
  func.func @transform_3(%arg0: i32) -> (i32, i32, i32) {
    %c0_i32 = arith.constant 0 : i32
    %c0_i32_0 = arith.constant 0 : i32
    %c0_i32_1 = arith.constant 0 : i32
    return %arg0, %c0_i32, %c0_i32_0 : i32, i32, i32
  }
}

module attributes {stable_mosaic.version = 11 : i64} {
  func.func @_conv_kernel(%arg0: i32, %arg1: memref<1x3x96xf32, #tpu.memory_space<vmem>>, %arg2: memref<2x96x32xf32, #tpu.memory_space<vmem>>, %arg3: memref<1x32xf32, #tpu.memory_space<vmem>>, %arg4: memref<1x2x32xf32, #tpu.memory_space<vmem>>) attributes {dimension_semantics = [#tpu.dimension_semantics<parallel>], iteration_bounds = array<i64: 6>, scalar_prefetch = 0 : i64, scratch_operands = 0 : i64, tpu.core_type = #tpu.core_type<tc>, window_params = [{transform_indices = @transform_0, window_bounds = array<i64: 1, 3, 96>}, {pipeline_mode = #tpu.pipeline_mode<synchronous>, transform_indices = @transform_1, window_bounds = array<i64: 2, 96, 32>}, {pipeline_mode = #tpu.pipeline_mode<synchronous>, transform_indices = @transform_2, window_bounds = array<i64: 1, 32>}, {transform_indices = @transform_3, window_bounds = array<i64: 1, 2, 32>}]} {
    %cst = arith.constant 0.000000e+00 : f32
    %0 = vector.broadcast %cst : f32 to vector<2x32xf32>
    %c0 = arith.constant 0 : index
    %c0_0 = arith.constant 0 : index
    %c0_1 = arith.constant 0 : index
    %1 = vector.load %arg1[%c0, %c0_0, %c0_1] : memref<1x3x96xf32, #tpu.memory_space<vmem>>, vector<1x2x96xf32>
    %2 = vector.shape_cast %1 : vector<1x2x96xf32> to vector<2x96xf32>
    %3 = arith.truncf %2 : vector<2x96xf32> to vector<2x96xbf16>
    %c0_2 = arith.constant 0 : index
    %c0_3 = arith.constant 0 : index
    %c0_4 = arith.constant 0 : index
    %4 = vector.load %arg2[%c0_2, %c0_3, %c0_4] : memref<2x96x32xf32, #tpu.memory_space<vmem>>, vector<1x96x32xf32>
    %5 = vector.shape_cast %4 : vector<1x96x32xf32> to vector<96x32xf32>
    %6 = arith.truncf %5 : vector<96x32xf32> to vector<96x32xbf16>
    %cst_5 = arith.constant dense<0.000000e+00> : vector<2x32xf32>
    %7 = tpu.matmul %3, %6, %cst_5 {dimension_numbers = #tpu.dot_dimension_numbers<[1], [0], [0], [1], [0, 0, 1, 1], [], []>} : vector<2x96xbf16>, vector<96x32xbf16>, vector<2x32xf32> -> vector<2x32xf32>
    %8 = arith.addf %0, %7 : vector<2x32xf32>
    %c0_6 = arith.constant 0 : index
    %c1 = arith.constant 1 : index
    %c0_7 = arith.constant 0 : index
    %9 = vector.load %arg1[%c0_6, %c1, %c0_7] : memref<1x3x96xf32, #tpu.memory_space<vmem>>, vector<1x2x96xf32>
    %10 = vector.shape_cast %9 : vector<1x2x96xf32> to vector<2x96xf32>
    %11 = arith.truncf %10 : vector<2x96xf32> to vector<2x96xbf16>
    %c1_8 = arith.constant 1 : index
    %c0_9 = arith.constant 0 : index
    %c0_10 = arith.constant 0 : index
    %12 = vector.load %arg2[%c1_8, %c0_9, %c0_10] : memref<2x96x32xf32, #tpu.memory_space<vmem>>, vector<1x96x32xf32>
    %13 = vector.shape_cast %12 : vector<1x96x32xf32> to vector<96x32xf32>
    %14 = arith.truncf %13 : vector<96x32xf32> to vector<96x32xbf16>
    %cst_11 = arith.constant dense<0.000000e+00> : vector<2x32xf32>
    %15 = tpu.matmul %11, %14, %cst_11 {dimension_numbers = #tpu.dot_dimension_numbers<[1], [0], [0], [1], [0, 0, 1, 1], [], []>} : vector<2x96xbf16>, vector<96x32xbf16>, vector<2x32xf32> -> vector<2x32xf32>
    %16 = arith.addf %8, %15 : vector<2x32xf32>
    %c0_12 = arith.constant 0 : index
    %c0_13 = arith.constant 0 : index
    %17 = vector.load %arg3[%c0_12, %c0_13] : memref<1x32xf32, #tpu.memory_space<vmem>>, vector<1x32xf32>
    %18 = vector.broadcast %17 : vector<1x32xf32> to vector<2x32xf32>
    %19 = arith.addf %16, %18 : vector<2x32xf32>
    %cst_14 = arith.constant 0.000000e+00 : f32
    %20 = vector.broadcast %cst_14 : f32 to vector<2x32xf32>
    %21 = arith.cmpf oge, %19, %20 : vector<2x32xf32>
    %cst_15 = arith.constant 2.000000e-01 : f32
    %22 = vector.broadcast %cst_15 : f32 to vector<2x32xf32>
    %23 = arith.mulf %22, %19 : vector<2x32xf32>
    %24 = arith.select %21, %19, %23 : vector<2x32xi1>, vector<2x32xf32>
    %c0_16 = arith.constant 0 : index
    %c0_17 = arith.constant 0 : index
    %c0_18 = arith.constant 0 : index
    %25 = vector.load %arg4[%c0_16, %c0_17, %c0_18] : memref<1x2x32xf32, #tpu.memory_space<vmem>>, vector<1x2x32xf32>
    %26 = vector.shape_cast %25 : vector<1x2x32xf32> to vector<2x32xf32>
    %27 = vector.shape_cast %24 : vector<2x32xf32> to vector<1x2x32xf32>
    tpu.vector_store %arg4[%c0_16, %c0_17, %c0_18], %27 {strides = array<i32>} : memref<1x2x32xf32, #tpu.memory_space<vmem>>, vector<1x2x32xf32>,
    return
  }
  func.func @transform_0(%arg0: i32) -> (i32, i32, i32) {
    %c0_i32 = arith.constant 0 : i32
    %c0_i32_0 = arith.constant 0 : i32
    %c0_i32_1 = arith.constant 0 : i32
    return %arg0, %c0_i32, %c0_i32_0 : i32, i32, i32
  }
  func.func @transform_1(%arg0: i32) -> (i32, i32, i32) {
    %c0_i32 = arith.constant 0 : i32
    %c0_i32_0 = arith.constant 0 : i32
    %c0_i32_1 = arith.constant 0 : i32
    %c0_i32_2 = arith.constant 0 : i32
    return %c0_i32, %c0_i32_0, %c0_i32_1 : i32, i32, i32
  }
  func.func @transform_2(%arg0: i32) -> (i32, i32) {
    %c0_i32 = arith.constant 0 : i32
    %c0_i32_0 = arith.constant 0 : i32
    %c0_i32_1 = arith.constant 0 : i32
    return %c0_i32, %c0_i32_0 : i32, i32
  }
  func.func @transform_3(%arg0: i32) -> (i32, i32, i32) {
    %c0_i32 = arith.constant 0 : i32
    %c0_i32_0 = arith.constant 0 : i32
    %c0_i32_1 = arith.constant 0 : i32
    return %arg0, %c0_i32, %c0_i32_0 : i32, i32, i32
  }
}

module attributes {stable_mosaic.version = 11 : i64} {
  func.func @_conv_kernel(%arg0: i32, %arg1: memref<1x6x32xf32, #tpu.memory_space<vmem>>, %arg2: memref<5x32x32xf32, #tpu.memory_space<vmem>>, %arg3: memref<1x32xf32, #tpu.memory_space<vmem>>, %arg4: memref<1x2x32xf32, #tpu.memory_space<vmem>>) attributes {dimension_semantics = [#tpu.dimension_semantics<parallel>], iteration_bounds = array<i64: 6>, scalar_prefetch = 0 : i64, scratch_operands = 0 : i64, tpu.core_type = #tpu.core_type<tc>, window_params = [{transform_indices = @transform_0, window_bounds = array<i64: 1, 6, 32>}, {pipeline_mode = #tpu.pipeline_mode<synchronous>, transform_indices = @transform_1, window_bounds = array<i64: 5, 32, 32>}, {pipeline_mode = #tpu.pipeline_mode<synchronous>, transform_indices = @transform_2, window_bounds = array<i64: 1, 32>}, {transform_indices = @transform_3, window_bounds = array<i64: 1, 2, 32>}]} {
    %cst = arith.constant 0.000000e+00 : f32
    %0 = vector.broadcast %cst : f32 to vector<2x32xf32>
    %c0 = arith.constant 0 : index
    %c0_0 = arith.constant 0 : index
    %c0_1 = arith.constant 0 : index
    %1 = vector.load %arg1[%c0, %c0_0, %c0_1] : memref<1x6x32xf32, #tpu.memory_space<vmem>>, vector<1x2x32xf32>
    %2 = vector.shape_cast %1 : vector<1x2x32xf32> to vector<2x32xf32>
    %3 = arith.truncf %2 : vector<2x32xf32> to vector<2x32xbf16>
    %c0_2 = arith.constant 0 : index
    %c0_3 = arith.constant 0 : index
    %c0_4 = arith.constant 0 : index
    %4 = vector.load %arg2[%c0_2, %c0_3, %c0_4] : memref<5x32x32xf32, #tpu.memory_space<vmem>>, vector<1x32x32xf32>
    %5 = vector.shape_cast %4 : vector<1x32x32xf32> to vector<32x32xf32>
    %6 = arith.truncf %5 : vector<32x32xf32> to vector<32x32xbf16>
    %cst_5 = arith.constant dense<0.000000e+00> : vector<2x32xf32>
    %7 = tpu.matmul %3, %6, %cst_5 {dimension_numbers = #tpu.dot_dimension_numbers<[1], [0], [0], [1], [0, 0, 1, 1], [], []>} : vector<2x32xbf16>, vector<32x32xbf16>, vector<2x32xf32> -> vector<2x32xf32>
    %8 = arith.addf %0, %7 : vector<2x32xf32>
    %c0_6 = arith.constant 0 : index
    %c1 = arith.constant 1 : index
    %c0_7 = arith.constant 0 : index
    %9 = vector.load %arg1[%c0_6, %c1, %c0_7] : memref<1x6x32xf32, #tpu.memory_space<vmem>>, vector<1x2x32xf32>
    %10 = vector.shape_cast %9 : vector<1x2x32xf32> to vector<2x32xf32>
    %11 = arith.truncf %10 : vector<2x32xf32> to vector<2x32xbf16>
    %c1_8 = arith.constant 1 : index
    %c0_9 = arith.constant 0 : index
    %c0_10 = arith.constant 0 : index
    %12 = vector.load %arg2[%c1_8, %c0_9, %c0_10] : memref<5x32x32xf32, #tpu.memory_space<vmem>>, vector<1x32x32xf32>
    %13 = vector.shape_cast %12 : vector<1x32x32xf32> to vector<32x32xf32>
    %14 = arith.truncf %13 : vector<32x32xf32> to vector<32x32xbf16>
    %cst_11 = arith.constant dense<0.000000e+00> : vector<2x32xf32>
    %15 = tpu.matmul %11, %14, %cst_11 {dimension_numbers = #tpu.dot_dimension_numbers<[1], [0], [0], [1], [0, 0, 1, 1], [], []>} : vector<2x32xbf16>, vector<32x32xbf16>, vector<2x32xf32> -> vector<2x32xf32>
    %16 = arith.addf %8, %15 : vector<2x32xf32>
    %c0_12 = arith.constant 0 : index
    %c2 = arith.constant 2 : index
    %c0_13 = arith.constant 0 : index
    %17 = vector.load %arg1[%c0_12, %c2, %c0_13] : memref<1x6x32xf32, #tpu.memory_space<vmem>>, vector<1x2x32xf32>
    %18 = vector.shape_cast %17 : vector<1x2x32xf32> to vector<2x32xf32>
    %19 = arith.truncf %18 : vector<2x32xf32> to vector<2x32xbf16>
    %c2_14 = arith.constant 2 : index
    %c0_15 = arith.constant 0 : index
    %c0_16 = arith.constant 0 : index
    %20 = vector.load %arg2[%c2_14, %c0_15, %c0_16] : memref<5x32x32xf32, #tpu.memory_space<vmem>>, vector<1x32x32xf32>
    %21 = vector.shape_cast %20 : vector<1x32x32xf32> to vector<32x32xf32>
    %22 = arith.truncf %21 : vector<32x32xf32> to vector<32x32xbf16>
    %cst_17 = arith.constant dense<0.000000e+00> : vector<2x32xf32>
    %23 = tpu.matmul %19, %22, %cst_17 {dimension_numbers = #tpu.dot_dimension_numbers<[1], [0], [0], [1], [0, 0, 1, 1], [], []>} : vector<2x32xbf16>, vector<32x32xbf16>, vector<2x32xf32> -> vector<2x32xf32>
    %24 = arith.addf %16, %23 : vector<2x32xf32>
    %c0_18 = arith.constant 0 : index
    %c3 = arith.constant 3 : index
    %c0_19 = arith.constant 0 : index
    %25 = vector.load %arg1[%c0_18, %c3, %c0_19] : memref<1x6x32xf32, #tpu.memory_space<vmem>>, vector<1x2x32xf32>
    %26 = vector.shape_cast %25 : vector<1x2x32xf32> to vector<2x32xf32>
    %27 = arith.truncf %26 : vector<2x32xf32> to vector<2x32xbf16>
    %c3_20 = arith.constant 3 : index
    %c0_21 = arith.constant 0 : index
    %c0_22 = arith.constant 0 : index
    %28 = vector.load %arg2[%c3_20, %c0_21, %c0_22] : memref<5x32x32xf32, #tpu.memory_space<vmem>>, vector<1x32x32xf32>
    %29 = vector.shape_cast %28 : vector<1x32x32xf32> to vector<32x32xf32>
    %30 = arith.truncf %29 : vector<32x32xf32> to vector<32x32xbf16>
    %cst_23 = arith.constant dense<0.000000e+00> : vector<2x32xf32>
    %31 = tpu.matmul %27, %30, %cst_23 {dimension_numbers = #tpu.dot_dimension_numbers<[1], [0], [0], [1], [0, 0, 1, 1], [], []>} : vector<2x32xbf16>, vector<32x32xbf16>, vector<2x32xf32> -> vector<2x32xf32>
    %32 = arith.addf %24, %31 : vector<2x32xf32>
    %c0_24 = arith.constant 0 : index
    %c4 = arith.constant 4 : index
    %c0_25 = arith.constant 0 : index
    %33 = vector.load %arg1[%c0_24, %c4, %c0_25] : memref<1x6x32xf32, #tpu.memory_space<vmem>>, vector<1x2x32xf32>
    %34 = vector.shape_cast %33 : vector<1x2x32xf32> to vector<2x32xf32>
    %35 = arith.truncf %34 : vector<2x32xf32> to vector<2x32xbf16>
    %c4_26 = arith.constant 4 : index
    %c0_27 = arith.constant 0 : index
    %c0_28 = arith.constant 0 : index
    %36 = vector.load %arg2[%c4_26, %c0_27, %c0_28] : memref<5x32x32xf32, #tpu.memory_space<vmem>>, vector<1x32x32xf32>
    %37 = vector.shape_cast %36 : vector<1x32x32xf32> to vector<32x32xf32>
    %38 = arith.truncf %37 : vector<32x32xf32> to vector<32x32xbf16>
    %cst_29 = arith.constant dense<0.000000e+00> : vector<2x32xf32>
    %39 = tpu.matmul %35, %38, %cst_29 {dimension_numbers = #tpu.dot_dimension_numbers<[1], [0], [0], [1], [0, 0, 1, 1], [], []>} : vector<2x32xbf16>, vector<32x32xbf16>, vector<2x32xf32> -> vector<2x32xf32>
    %40 = arith.addf %32, %39 : vector<2x32xf32>
    %c0_30 = arith.constant 0 : index
    %c0_31 = arith.constant 0 : index
    %41 = vector.load %arg3[%c0_30, %c0_31] : memref<1x32xf32, #tpu.memory_space<vmem>>, vector<1x32xf32>
    %42 = vector.broadcast %41 : vector<1x32xf32> to vector<2x32xf32>
    %43 = arith.addf %40, %42 : vector<2x32xf32>
    %cst_32 = arith.constant 0.000000e+00 : f32
    %44 = vector.broadcast %cst_32 : f32 to vector<2x32xf32>
    %45 = arith.cmpf oge, %43, %44 : vector<2x32xf32>
    %cst_33 = arith.constant 2.000000e-01 : f32
    %46 = vector.broadcast %cst_33 : f32 to vector<2x32xf32>
    %47 = arith.mulf %46, %43 : vector<2x32xf32>
    %48 = arith.select %45, %43, %47 : vector<2x32xi1>, vector<2x32xf32>
    %c0_34 = arith.constant 0 : index
    %c0_35 = arith.constant 0 : index
    %c0_36 = arith.constant 0 : index
    %49 = vector.load %arg4[%c0_34, %c0_35, %c0_36] : memref<1x2x32xf32, #tpu.memory_space<vmem>>, vector<1x2x32xf32>
    %50 = vector.shape_cast %49 : vector<1x2x32xf32> to vector<2x32xf32>
    %51 = vector.shape_cast %48 : vector<2x32xf32> to vector<1x2x32xf32>
    tpu.vector_store %arg4[%c0_34, %c0_35, %c0_36], %51 {strides = array<i32>} : memref<1x2x32xf32, #tpu.memory_space<vmem>>, vector<1x2x32xf32>,
    return
  }
  func.func @transform_0(%arg0: i32) -> (i32, i32, i32) {
    %c0_i32 = arith.constant 0 : i32
    %c0_i32_0 = arith.constant 0 : i32
    %c0_i32_1 = arith.constant 0 : i32
    return %arg0, %c0_i32, %c0_i32_0 : i32, i32, i32
  }
  func.func @transform_1(%arg0: i32) -> (i32, i32, i32) {
    %c0_i32 = arith.constant 0 : i32
    %c0_i32_0 = arith.constant 0 : i32
    %c0_i32_1 = arith.constant 0 : i32
    %c0_i32_2 = arith.constant 0 : i32
    return %c0_i32, %c0_i32_0, %c0_i32_1 : i32, i32, i32
  }
  func.func @transform_2(%arg0: i32) -> (i32, i32) {
    %c0_i32 = arith.constant 0 : i32
    %c0_i32_0 = arith.constant 0 : i32
    %c0_i32_1 = arith.constant 0 : i32
    return %c0_i32, %c0_i32_0 : i32, i32
  }
  func.func @transform_3(%arg0: i32) -> (i32, i32, i32) {
    %c0_i32 = arith.constant 0 : i32
    %c0_i32_0 = arith.constant 0 : i32
    %c0_i32_1 = arith.constant 0 : i32
    return %arg0, %c0_i32, %c0_i32_0 : i32, i32, i32
  }
}

module attributes {stable_mosaic.version = 11 : i64} {
  func.func @_conv_kernel(%arg0: i32, %arg1: memref<1x4x32xf32, #tpu.memory_space<vmem>>, %arg2: memref<3x32x1xf32, #tpu.memory_space<vmem>>, %arg3: memref<1x1xf32, #tpu.memory_space<vmem>>, %arg4: memref<1x2x1xf32, #tpu.memory_space<vmem>>) attributes {dimension_semantics = [#tpu.dimension_semantics<parallel>], iteration_bounds = array<i64: 6>, scalar_prefetch = 0 : i64, scratch_operands = 0 : i64, tpu.core_type = #tpu.core_type<tc>, window_params = [{transform_indices = @transform_0, window_bounds = array<i64: 1, 4, 32>}, {pipeline_mode = #tpu.pipeline_mode<synchronous>, transform_indices = @transform_1, window_bounds = array<i64: 3, 32, 1>}, {pipeline_mode = #tpu.pipeline_mode<synchronous>, transform_indices = @transform_2, window_bounds = array<i64: 1, 1>}, {transform_indices = @transform_3, window_bounds = array<i64: 1, 2, 1>}]} {
    %cst = arith.constant 0.000000e+00 : f32
    %0 = vector.broadcast %cst : f32 to vector<2x1xf32>
    %c0 = arith.constant 0 : index
    %c0_0 = arith.constant 0 : index
    %c0_1 = arith.constant 0 : index
    %1 = vector.load %arg1[%c0, %c0_0, %c0_1] : memref<1x4x32xf32, #tpu.memory_space<vmem>>, vector<1x2x32xf32>
    %2 = vector.shape_cast %1 : vector<1x2x32xf32> to vector<2x32xf32>
    %3 = arith.truncf %2 : vector<2x32xf32> to vector<2x32xbf16>
    %c0_2 = arith.constant 0 : index
    %c0_3 = arith.constant 0 : index
    %c0_4 = arith.constant 0 : index
    %4 = vector.load %arg2[%c0_2, %c0_3, %c0_4] : memref<3x32x1xf32, #tpu.memory_space<vmem>>, vector<1x32x1xf32>
    %5 = vector.shape_cast %4 : vector<1x32x1xf32> to vector<32x1xf32>
    %6 = arith.truncf %5 : vector<32x1xf32> to vector<32x1xbf16>
    %cst_5 = arith.constant dense<0.000000e+00> : vector<2x1xf32>
    %7 = tpu.matmul %3, %6, %cst_5 {dimension_numbers = #tpu.dot_dimension_numbers<[1], [0], [0], [1], [0, 0, 1, 1], [], []>} : vector<2x32xbf16>, vector<32x1xbf16>, vector<2x1xf32> -> vector<2x1xf32>
    %8 = arith.addf %0, %7 : vector<2x1xf32>
    %c0_6 = arith.constant 0 : index
    %c1 = arith.constant 1 : index
    %c0_7 = arith.constant 0 : index
    %9 = vector.load %arg1[%c0_6, %c1, %c0_7] : memref<1x4x32xf32, #tpu.memory_space<vmem>>, vector<1x2x32xf32>
    %10 = vector.shape_cast %9 : vector<1x2x32xf32> to vector<2x32xf32>
    %11 = arith.truncf %10 : vector<2x32xf32> to vector<2x32xbf16>
    %c1_8 = arith.constant 1 : index
    %c0_9 = arith.constant 0 : index
    %c0_10 = arith.constant 0 : index
    %12 = vector.load %arg2[%c1_8, %c0_9, %c0_10] : memref<3x32x1xf32, #tpu.memory_space<vmem>>, vector<1x32x1xf32>
    %13 = vector.shape_cast %12 : vector<1x32x1xf32> to vector<32x1xf32>
    %14 = arith.truncf %13 : vector<32x1xf32> to vector<32x1xbf16>
    %cst_11 = arith.constant dense<0.000000e+00> : vector<2x1xf32>
    %15 = tpu.matmul %11, %14, %cst_11 {dimension_numbers = #tpu.dot_dimension_numbers<[1], [0], [0], [1], [0, 0, 1, 1], [], []>} : vector<2x32xbf16>, vector<32x1xbf16>, vector<2x1xf32> -> vector<2x1xf32>
    %16 = arith.addf %8, %15 : vector<2x1xf32>
    %c0_12 = arith.constant 0 : index
    %c2 = arith.constant 2 : index
    %c0_13 = arith.constant 0 : index
    %17 = vector.load %arg1[%c0_12, %c2, %c0_13] : memref<1x4x32xf32, #tpu.memory_space<vmem>>, vector<1x2x32xf32>
    %18 = vector.shape_cast %17 : vector<1x2x32xf32> to vector<2x32xf32>
    %19 = arith.truncf %18 : vector<2x32xf32> to vector<2x32xbf16>
    %c2_14 = arith.constant 2 : index
    %c0_15 = arith.constant 0 : index
    %c0_16 = arith.constant 0 : index
    %20 = vector.load %arg2[%c2_14, %c0_15, %c0_16] : memref<3x32x1xf32, #tpu.memory_space<vmem>>, vector<1x32x1xf32>
    %21 = vector.shape_cast %20 : vector<1x32x1xf32> to vector<32x1xf32>
    %22 = arith.truncf %21 : vector<32x1xf32> to vector<32x1xbf16>
    %cst_17 = arith.constant dense<0.000000e+00> : vector<2x1xf32>
    %23 = tpu.matmul %19, %22, %cst_17 {dimension_numbers = #tpu.dot_dimension_numbers<[1], [0], [0], [1], [0, 0, 1, 1], [], []>} : vector<2x32xbf16>, vector<32x1xbf16>, vector<2x1xf32> -> vector<2x1xf32>
    %24 = arith.addf %16, %23 : vector<2x1xf32>
    %c0_18 = arith.constant 0 : index
    %c0_19 = arith.constant 0 : index
    %25 = vector.load %arg3[%c0_18, %c0_19] : memref<1x1xf32, #tpu.memory_space<vmem>>, vector<1x1xf32>
    %26 = vector.broadcast %25 : vector<1x1xf32> to vector<2x1xf32>
    %27 = arith.addf %24, %26 : vector<2x1xf32>
    %c0_20 = arith.constant 0 : index
    %c0_21 = arith.constant 0 : index
    %c0_22 = arith.constant 0 : index
    %28 = vector.load %arg4[%c0_20, %c0_21, %c0_22] : memref<1x2x1xf32, #tpu.memory_space<vmem>>, vector<1x2x1xf32>
    %29 = vector.shape_cast %28 : vector<1x2x1xf32> to vector<2x1xf32>
    %30 = vector.shape_cast %27 : vector<2x1xf32> to vector<1x2x1xf32>
    tpu.vector_store %arg4[%c0_20, %c0_21, %c0_22], %30 {strides = array<i32>} : memref<1x2x1xf32, #tpu.memory_space<vmem>>, vector<1x2x1xf32>,
    return
  }
  func.func @transform_0(%arg0: i32) -> (i32, i32, i32) {
    %c0_i32 = arith.constant 0 : i32
    %c0_i32_0 = arith.constant 0 : i32
    %c0_i32_1 = arith.constant 0 : i32
    return %arg0, %c0_i32, %c0_i32_0 : i32, i32, i32
  }
  func.func @transform_1(%arg0: i32) -> (i32, i32, i32) {
    %c0_i32 = arith.constant 0 : i32
    %c0_i32_0 = arith.constant 0 : i32
    %c0_i32_1 = arith.constant 0 : i32
    %c0_i32_2 = arith.constant 0 : i32
    return %c0_i32, %c0_i32_0, %c0_i32_1 : i32, i32, i32
  }
  func.func @transform_2(%arg0: i32) -> (i32, i32) {
    %c0_i32 = arith.constant 0 : i32
    %c0_i32_0 = arith.constant 0 : i32
    %c0_i32_1 = arith.constant 0 : i32
    return %c0_i32, %c0_i32_0 : i32, i32
  }
  func.func @transform_3(%arg0: i32) -> (i32, i32, i32) {
    %c0_i32 = arith.constant 0 : i32
    %c0_i32_0 = arith.constant 0 : i32
    %c0_i32_1 = arith.constant 0 : i32
    return %arg0, %c0_i32, %c0_i32_0 : i32, i32, i32
  }
}

</mosaic_0001>

<llo_original>
// kernel: _lambda_.6
$region0: #{_lambda_.6}
  #allocation0 [shape = 'u32[]', space=smem, size = 0x4, offset = 0x4, fixed_abs, tag = 'smem constant byte address 0x4 - core index']
  #allocation1 [shape = 'u32[144,128]{1,0:T(1,128)}', space=vmem, size = 0x12000, scoped, tag = 'internal scratch']
  %s0 = inlined_call_operand.vmem [shape: f32[6,36,3], index: 0, kind: input, shape index: {}]
  %s1 = inlined_call_operand.vmem [shape: f32[2,3,32], index: 1, kind: input, shape index: {}]
  %s2 = inlined_call_operand.vmem [shape: f32[1,32], index: 2, kind: input, shape index: {}]
  %s3 = inlined_call_operand.vmem [shape: f32[6,35,32], index: 3, kind: output, shape index: {}]
  %s4 = sld [smem:[#allocation0]]
  $region45: #{_lambda_.6} parent=0
    _
  %s6 = ssub.s32 1, %s4
  %s7 = scalar_select 0, %s6, %s4
  loop: start=0, step=1, limit=8
  $region2: #{_lambda_.6} parent=0 // loop_pre_header
    _
  $region3: #{_lambda_.6} parent=0 // loop_header
    %s9 = sphi 0, %s13
    %p10 = scmp.ge.s32.totalorder %s9, 8
    %s19 = sphi 0, %s21
    %s22 = sphi 0, %s19
    %s23 = sphi 0, %s22
    %s39 = sphi 0, %s23
    %s43 = sphi 0, %s43
    %s45 = sphi 0, %s43
    %s46 = sphi 0, %s45
    %s60 = sphi 0, %s46
    %s64 = sphi 0, %s64
    %s66 = sphi 0, %s64
    %s67 = sphi 0, %s66
    %s81 = sphi 0, %s67
    %s87 = sphi 0, %s89
    %s90 = sphi 0, %s87
    %s91 = sphi 0, %s90
    %s107 = sphi 0, %s91
  $region4: #{_lambda_.6} parent=0 // loop_header_branch
    %12 = sbr.rel (%p10) target = $region8
  $region5: #{_lambda_.6} parent=0 // loop_body
    %s14 = ssub.s32 %s9, 1
    %s15 = ssub.s32 %s9, 2
    %s16 = sadd.s32 %s9, 1
    %s17 = ssub.s32 %s9, %s16
    %p18 = scmp.eq.s32.totalorder %s17, 0
    %s20 = sadd.s32 %s19, 1
    %s21 = scalar_select %p18, %s19, %s20
    %p24 = pneg %p18
    %p25 = scmp.eq.s32.totalorder %s9, 5
    %p26 = por %p24, %p25
    %p27 = scmp.ne.s32.totalorder %s19, %s22
    %p28 = scmp.eq.s32.totalorder %s9, 0
    %p29 = por %p27, %p28
    %p30 = scmp.ne.s32.totalorder %s19, %s22
    %p31 = scmp.eq.s32.totalorder %s14, 5
    %p32 = por %p30, %p31
    %p33 = scmp.ne.s32.totalorder %s22, %s23
    %p34 = scmp.eq.s32.totalorder %s14, 0
    %p35 = por %p33, %p34
    %p36 = scmp.ne.s32.totalorder %s22, %s23
    %p37 = scmp.eq.s32.totalorder %s15, 5
    %p38 = por %p36, %p37
    %p40 = scmp.ne.s32.totalorder %s23, %s39
    %p41 = scmp.eq.s32.totalorder %s15, 0
    %p42 = por %p40, %p41
    %s44 = sadd.s32 %s43, 1
    %p47 = scmp.eq.s32.totalorder %s9, 5
    %p48 = scmp.ne.s32.totalorder %s43, %s45
    %p49 = scmp.eq.s32.totalorder %s9, 0
    %p50 = por %p48, %p49
    %p51 = scmp.ne.s32.totalorder %s43, %s45
    %p52 = scmp.eq.s32.totalorder %s14, 5
    %p53 = por %p51, %p52
    %p54 = scmp.ne.s32.totalorder %s45, %s46
    %p55 = scmp.eq.s32.totalorder %s14, 0
    %p56 = por %p54, %p55
    %p57 = scmp.ne.s32.totalorder %s45, %s46
    %p58 = scmp.eq.s32.totalorder %s15, 5
    %p59 = por %p57, %p58
    %p61 = scmp.ne.s32.totalorder %s46, %s60
    %p62 = scmp.eq.s32.totalorder %s15, 0
    %p63 = por %p61, %p62
    %s65 = sadd.s32 %s64, 1
    %p68 = scmp.eq.s32.totalorder %s9, 5
    %p69 = scmp.ne.s32.totalorder %s64, %s66
    %p70 = scmp.eq.s32.totalorder %s9, 0
    %p71 = por %p69, %p70
    %p72 = scmp.ne.s32.totalorder %s64, %s66
    %p73 = scmp.eq.s32.totalorder %s14, 5
    %p74 = por %p72, %p73
    %p75 = scmp.ne.s32.totalorder %s66, %s67
    %p76 = scmp.eq.s32.totalorder %s14, 0
    %p77 = por %p75, %p76
    %p78 = scmp.ne.s32.totalorder %s66, %s67
    %p79 = scmp.eq.s32.totalorder %s15, 5
    %p80 = por %p78, %p79
    %p82 = scmp.ne.s32.totalorder %s67, %s81
    %p83 = scmp.eq.s32.totalorder %s15, 0
    %p84 = por %p82, %p83
    %s85 = ssub.s32 %s9, %s16
    %p86 = scmp.eq.s32.totalorder %s85, 0
    %s88 = sadd.s32 %s87, 1
    %s89 = scalar_select %p86, %s87, %s88
    %p92 = pneg %p86
    %p93 = scmp.eq.s32.totalorder %s9, 5
    %p94 = por %p92, %p93
    %p95 = scmp.ne.s32.totalorder %s87, %s90
    %p96 = scmp.eq.s32.totalorder %s9, 0
    %p97 = por %p95, %p96
    %p98 = scmp.ne.s32.totalorder %s87, %s90
    %p99 = scmp.eq.s32.totalorder %s14, 5
    %p100 = por %p98, %p99
    %p101 = scmp.ne.s32.totalorder %s90, %s91
    %p102 = scmp.eq.s32.totalorder %s14, 0
    %p103 = por %p101, %p102
    %p104 = scmp.ne.s32.totalorder %s90, %s91
    %p105 = scmp.eq.s32.totalorder %s15, 5
    %p106 = por %p104, %p105
    %p108 = scmp.ne.s32.totalorder %s91, %s107
    %p109 = scmp.eq.s32.totalorder %s15, 0
    %p110 = por %p108, %p109
    %p111 = scmp.le.s32.totalorder 1, %s9
    %p112 = scmp.lt.s32.totalorder %s9, 7
    %p113 = pnand %p111, %p112
    %p114 = pneg %p113
    // Predicated region
    $region9: #{_lambda_.6} parent=5 // pred_check
      _
    $region10: #{_lambda_.6} parent=5 // pred_check_branch
      %116 = sbr.rel (%p113) target = $region12
    $region11: #{_lambda_.6} parent=5 // pred_region
      %s117 = ssub.s32 %s9, 1
      // Predicated region
      $region13: #{_lambda_.6} parent=11 // pred_check
        %p118 = pneg %p56
      $region14: #{_lambda_.6} parent=11 // pred_check_branch
        %120 = sbr.rel (%p118) target = $region16
      $region15: #{_lambda_.6} parent=11 // pred_region
        _
      $region16: #{_lambda_.6} parent=11 // pred_fallthru
        _
      // Predicated region
      $region17: #{_lambda_.6} parent=11 // pred_check
        %p121 = pneg %p77
      $region18: #{_lambda_.6} parent=11 // pred_check_branch
        %123 = sbr.rel (%p121) target = $region20
      $region19: #{_lambda_.6} parent=11 // pred_region
        _
      $region20: #{_lambda_.6} parent=11 // pred_fallthru
        _
    $region12: #{_lambda_.6} parent=5 // pred_fallthru
      _
    %p124 = scmp.lt.s32.totalorder %s9, 6
    // Predicated region
    $region21: #{_lambda_.6} parent=5 // pred_check
      %p125 = pneg %p124
    $region22: #{_lambda_.6} parent=5 // pred_check_branch
      %127 = sbr.rel (%p125) target = $region24
    $region23: #{_lambda_.6} parent=5 // pred_region
      // Predicated region
      $region25: #{_lambda_.6} parent=23 // pred_check
        %p128 = pneg %p29
      $region26: #{_lambda_.6} parent=23 // pred_check_branch
        %130 = sbr.rel (%p128) target = $region28
      $region27: #{_lambda_.6} parent=23 // pred_region
        %p131 = scmp.lt.s32.totalorder %s9, 5
        %s132 = scalar_select %p131, %s9, 5
        %s133 = smul.addr %s132, 5
        %s134 = smul.addr %s133, 8
        %s135 = scalar_lea.vmem %s0, %s134
      $region28: #{_lambda_.6} parent=23 // pred_fallthru
        _
    $region24: #{_lambda_.6} parent=5 // pred_fallthru
      _
    %p136 = scmp.le.s32.totalorder 1, %s9
    %p137 = scmp.lt.s32.totalorder %s9, 7
    %p138 = pnand %p136, %p137
    %p139 = pneg %p138
    // Predicated region
    $region29: #{_lambda_.6} parent=5 // pred_check
      _
    $region30: #{_lambda_.6} parent=5 // pred_check_branch
      %141 = sbr.rel (%p138) target = $region32
    $region31: #{_lambda_.6} parent=5 // pred_region
      %s142 = ssub.s32 %s9, 1
      %p143 = scmp.lt.s32.totalorder %s14, 5
      %s144 = scalar_select %p143, %s14, 5
      %s145 = smul.addr %s144, 5
      %s146 = smul.addr %s145, 8
      %s147 = scalar_lea.vmem %s0, %s146
      %p148 = pneg %p35
      %p149 = pneg %p32
      %p150 = pneg %p56
      %p151 = pneg %p53
      %p152 = pneg %p77
      %p153 = pneg %p74
      %p154 = pneg %p103
      %p155 = pneg %p100
      %p156 = scmp.lt.s32.totalorder %s14, 5
      %s157 = scalar_select %p156, %s14, 5
      %s158 = smul.addr %s157, 5
      %s159 = smul.addr %s158, 8
      %s160 = scalar_lea.vmem %s3, %s159
      %p161 = scmp.lt.s32.totalorder %s14, 5
      %s162 = scalar_select %p161, %s14, 5
      %s163 = smul.addr %s162, 5
      %s164 = smul.addr %s163, 8
      %s165 = scalar_lea.vmem %s0, %s164
      %p166 = scmp.lt.s32.totalorder %s14, 5
      %s167 = scalar_select %p166, %s14, 5
      %s168 = smul.addr %s167, 5
      %s169 = smul.addr %s168, 8
      %s170 = scalar_lea.vmem %s3, %s169
      %v171 = vld [vmem:[%s165] sm:$0xff]
      %v172 = vld [vmem:[%s165 + $0x8] sm:$0xff]
      %v173 = vld [vmem:[%s165 + $0x10] sm:$0xff]
      %v174 = vld [vmem:[%s165 + $0x18] sm:$0xff]
      %v175 = vld [vmem:[%s165 + $0x20] sm:$0x7]
      %v176 = vld [vmem:[%s1] sm:$0x7]
      %178 = vset.pattern.permute.xlu0 0
      %179 = vperm.xlu0 %178, %v171
      %v180 = vpop.permute.xlu0 %179
      %183 = vset.pattern.permute.xlu0 0
      %184 = vperm.xlu0 %183, %v172
      %v185 = vpop.permute.xlu0 %184
      %188 = vset.pattern.permute.xlu0 0
      %189 = vperm.xlu0 %188, %v173
      %v190 = vpop.permute.xlu0 %189
      %193 = vset.pattern.permute.xlu0 0
      %194 = vperm.xlu0 %193, %v174
      %v195 = vpop.permute.xlu0 %194
      %198 = vset.pattern.permute.xlu0 0
      %199 = vperm.xlu0 %198, %v175
      %v200 = vpop.permute.xlu0 %199
      %v202 = vlaneseq
      %v203 = vshrl.u32 %v202, 7
      %v204 = vsub.s32 0, %v203
      %v205 = vrot.slane %v176, %v204
      %v206 = vmul.f32 %v180, %v205
      %v207 = vmul.f32 %v185, %v205
      %v208 = vmul.f32 %v190, %v205
      %v209 = vmul.f32 %v195, %v205
      %v210 = vmul.f32 %v200, %v205
      %v211 = vadd.f32 %v206, 0.0
      %v212 = vadd.f32 %v207, 0.0
      %v213 = vadd.f32 %v208, 0.0
      %v214 = vadd.f32 %v209, 0.0
      %v215 = vadd.f32 %v210, 0.0
      %216 = vset.pattern.permute.xlu0 1
      %217 = vperm.xlu0 %216, %v171
      %v218 = vpop.permute.xlu0 %217
      %220 = vset.pattern.permute.xlu0 1
      %221 = vperm.xlu0 %220, %v172
      %v222 = vpop.permute.xlu0 %221
      %224 = vset.pattern.permute.xlu0 1
      %225 = vperm.xlu0 %224, %v173
      %v226 = vpop.permute.xlu0 %225
      %228 = vset.pattern.permute.xlu0 1
      %229 = vperm.xlu0 %228, %v174
      %v230 = vpop.permute.xlu0 %229
      %232 = vset.pattern.permute.xlu0 1
      %233 = vperm.xlu0 %232, %v175
      %v234 = vpop.permute.xlu0 %233
      %v236 = vlaneseq
      %v237 = vshrl.u32 %v236, 7
      %v238 = vsub.s32 1, %v237
      %v239 = vrot.slane %v176, %v238
      %v240 = vmul.f32 %v218, %v239
      %v241 = vmul.f32 %v222, %v239
      %v242 = vmul.f32 %v226, %v239
      %v243 = vmul.f32 %v230, %v239
      %v244 = vmul.f32 %v234, %v239
      %v245 = vadd.f32 %v211, %v240
      %v246 = vadd.f32 %v212, %v241
      %v247 = vadd.f32 %v213, %v242
      %v248 = vadd.f32 %v214, %v243
      %v249 = vadd.f32 %v215, %v244
      %250 = vset.pattern.permute.xlu0 2
      %251 = vperm.xlu0 %250, %v171
      %v252 = vpop.permute.xlu0 %251
      %254 = vset.pattern.permute.xlu0 2
      %255 = vperm.xlu0 %254, %v172
      %v256 = vpop.permute.xlu0 %255
      %258 = vset.pattern.permute.xlu0 2
      %259 = vperm.xlu0 %258, %v173
      %v260 = vpop.permute.xlu0 %259
      %262 = vset.pattern.permute.xlu0 2
      %263 = vperm.xlu0 %262, %v174
      %v264 = vpop.permute.xlu0 %263
      %266 = vset.pattern.permute.xlu0 2
      %267 = vperm.xlu0 %266, %v175
      %v268 = vpop.permute.xlu0 %267
      %v270 = vlaneseq
      %v271 = vshrl.u32 %v270, 7
      %v272 = vsub.s32 2, %v271
      %v273 = vrot.slane %v176, %v272
      %v274 = vmul.f32 %v252, %v273
      %v275 = vmul.f32 %v256, %v273
      %v276 = vmul.f32 %v260, %v273
      %v277 = vmul.f32 %v264, %v273
      %v278 = vmul.f32 %v268, %v273
      %v279 = vadd.f32 %v245, %v274
      %v280 = vadd.f32 %v246, %v275
      %v281 = vadd.f32 %v247, %v276
      %v282 = vadd.f32 %v248, %v277
      %v283 = vadd.f32 %v249, %v278
      %v284 = vld [vmem:[%s165 + $0x1] sm:$0xff]
      %v285 = vld [vmem:[%s165 + $0x9] sm:$0xff]
      %v286 = vld [vmem:[%s165 + $0x11] sm:$0xff]
      %v287 = vld [vmem:[%s165 + $0x19] sm:$0xff]
      %v288 = vld [vmem:[%s165 + $0x21] sm:$0x7]
      %s289 = scalar_lea.vmem %s1, 4
      %v290 = vld [vmem:[%s289] sm:$0x7]
      %292 = vset.pattern.permute.xlu0 0
      %293 = vperm.xlu0 %292, %v284
      %v294 = vpop.permute.xlu0 %293
      %297 = vset.pattern.permute.xlu0 0
      %298 = vperm.xlu0 %297, %v285
      %v299 = vpop.permute.xlu0 %298
      %302 = vset.pattern.permute.xlu0 0
      %303 = vperm.xlu0 %302, %v286
      %v304 = vpop.permute.xlu0 %303
      %307 = vset.pattern.permute.xlu0 0
      %308 = vperm.xlu0 %307, %v287
      %v309 = vpop.permute.xlu0 %308
      %312 = vset.pattern.permute.xlu0 0
      %313 = vperm.xlu0 %312, %v288
      %v314 = vpop.permute.xlu0 %313
      %v316 = vlaneseq
      %v317 = vshrl.u32 %v316, 7
      %v318 = vsub.s32 0, %v317
      %v319 = vrot.slane %v290, %v318
      %v320 = vmul.f32 %v294, %v319
      %v321 = vmul.f32 %v299, %v319
      %v322 = vmul.f32 %v304, %v319
      %v323 = vmul.f32 %v309, %v319
      %v324 = vmul.f32 %v314, %v319
      %v325 = vadd.f32 %v279, %v320
      %v326 = vadd.f32 %v280, %v321
      %v327 = vadd.f32 %v281, %v322
      %v328 = vadd.f32 %v282, %v323
      %v329 = vadd.f32 %v283, %v324
      %330 = vset.pattern.permute.xlu0 1
      %331 = vperm.xlu0 %330, %v284
      %v332 = vpop.permute.xlu0 %331
      %334 = vset.pattern.permute.xlu0 1
      %335 = vperm.xlu0 %334, %v285
      %v336 = vpop.permute.xlu0 %335
      %338 = vset.pattern.permute.xlu0 1
      %339 = vperm.xlu0 %338, %v286
      %v340 = vpop.permute.xlu0 %339
      %342 = vset.pattern.permute.xlu0 1
      %343 = vperm.xlu0 %342, %v287
      %v344 = vpop.permute.xlu0 %343
      %346 = vset.pattern.permute.xlu0 1
      %347 = vperm.xlu0 %346, %v288
      %v348 = vpop.permute.xlu0 %347
      %v350 = vlaneseq
      %v351 = vshrl.u32 %v350, 7
      %v352 = vsub.s32 1, %v351
      %v353 = vrot.slane %v290, %v352
      %v354 = vmul.f32 %v332, %v353
      %v355 = vmul.f32 %v336, %v353
      %v356 = vmul.f32 %v340, %v353
      %v357 = vmul.f32 %v344, %v353
      %v358 = vmul.f32 %v348, %v353
      %v359 = vadd.f32 %v325, %v354
      %v360 = vadd.f32 %v326, %v355
      %v361 = vadd.f32 %v327, %v356
      %v362 = vadd.f32 %v328, %v357
      %v363 = vadd.f32 %v329, %v358
      %364 = vset.pattern.permute.xlu0 2
      %365 = vperm.xlu0 %364, %v284
      %v366 = vpop.permute.xlu0 %365
      %368 = vset.pattern.permute.xlu0 2
      %369 = vperm.xlu0 %368, %v285
      %v370 = vpop.permute.xlu0 %369
      %372 = vset.pattern.permute.xlu0 2
      %373 = vperm.xlu0 %372, %v286
      %v374 = vpop.permute.xlu0 %373
      %376 = vset.pattern.permute.xlu0 2
      %377 = vperm.xlu0 %376, %v287
      %v378 = vpop.permute.xlu0 %377
      %380 = vset.pattern.permute.xlu0 2
      %381 = vperm.xlu0 %380, %v288
      %v382 = vpop.permute.xlu0 %381
      %v384 = vlaneseq
      %v385 = vshrl.u32 %v384, 7
      %v386 = vsub.s32 2, %v385
      %v387 = vrot.slane %v290, %v386
      %v388 = vmul.f32 %v366, %v387
      %v389 = vmul.f32 %v370, %v387
      %v390 = vmul.f32 %v374, %v387
      %v391 = vmul.f32 %v378, %v387
      %v392 = vmul.f32 %v382, %v387
      %v393 = vadd.f32 %v359, %v388
      %v394 = vadd.f32 %v360, %v389
      %v395 = vadd.f32 %v361, %v390
      %v396 = vadd.f32 %v362, %v391
      %v397 = vadd.f32 %v363, %v392
      %v398 = vld [vmem:[%s2] sm:$0x1]
      %v400 = vlaneseq
      %v401 = vshrl.u32 %v400, 7
      %v402 = vsub.s32 0, %v401
      %v403 = vrot.slane %v398, %v402
      %v405 = vadd.f32 %v393, %v403
      %v406 = vadd.f32 %v394, %v403
      %v407 = vadd.f32 %v395, %v403
      %v408 = vadd.f32 %v396, %v403
      %v409 = vadd.f32 %v397, %v403
      %vm410 = vcmp.ge.f32.partialorder %v405, 0.0
      %vm411 = vcmp.ge.f32.partialorder %v406, 0.0
      %vm412 = vcmp.ge.f32.partialorder %v407, 0.0
      %vm413 = vcmp.ge.f32.partialorder %v408, 0.0
      %vm414 = vcmp.ge.f32.partialorder %v409, 0.0
      %v415 = vmul.f32 %v405, 0.2
      %v416 = vmul.f32 %v406, 0.2
      %v417 = vmul.f32 %v407, 0.2
      %v418 = vmul.f32 %v408, 0.2
      %v419 = vmul.f32 %v409, 0.2
      %v420 = vsel %vm410, %v405, %v415
      %v421 = vsel %vm411, %v406, %v416
      %v422 = vsel %vm412, %v407, %v417
      %v423 = vsel %vm413, %v408, %v418
      %v424 = vsel %vm414, %v409, %v419
      %vm425 = vcmask 261120
      %426 = vst.msk [vmem:[%s170] sm:$0xff] %vm425, %v420
      %427 = vst.msk [vmem:[%s170 + $0x8] sm:$0xff] %vm425, %v421
      %428 = vst.msk [vmem:[%s170 + $0x10] sm:$0xff] %vm425, %v422
      %429 = vst.msk [vmem:[%s170 + $0x18] sm:$0xff] %vm425, %v423
      %vm430 = vcmask 256000
      %431 = vst.msk [vmem:[%s170 + $0x20] sm:$0x7] %vm430, %v424
      %p432 = scmp.lt.s32.totalorder %s14, 5
      %s433 = scalar_select %p432, %s14, 5
      %s434 = smul.addr %s433, 5
      %s435 = smul.addr %s434, 8
      %s436 = scalar_lea.vmem %s3, %s435
      // Predicated region
      $region33: #{_lambda_.6} parent=31 // pred_check
        %p437 = pneg %p100
      $region34: #{_lambda_.6} parent=31 // pred_check_branch
        %439 = sbr.rel (%p437) target = $region36
      $region35: #{_lambda_.6} parent=31 // pred_region
        _
      $region36: #{_lambda_.6} parent=31 // pred_fallthru
        _
    $region32: #{_lambda_.6} parent=5 // pred_fallthru
      _
    %p440 = scmp.le.s32.totalorder 2, %s9
    // Predicated region
    $region37: #{_lambda_.6} parent=5 // pred_check
      %p441 = pneg %p440
    $region38: #{_lambda_.6} parent=5 // pred_check_branch
      %443 = sbr.rel (%p441) target = $region40
    $region39: #{_lambda_.6} parent=5 // pred_region
      %s444 = ssub.s32 %s9, 2
      // Predicated region
      $region41: #{_lambda_.6} parent=39 // pred_check
        %p445 = pneg %p106
      $region42: #{_lambda_.6} parent=39 // pred_check_branch
        %447 = sbr.rel (%p445) target = $region44
      $region43: #{_lambda_.6} parent=39 // pred_region
        %p448 = scmp.lt.s32.totalorder %s15, 5
        %s449 = scalar_select %p448, %s15, 5
        %s450 = smul.addr %s449, 5
        %s451 = smul.addr %s450, 8
        %s452 = scalar_lea.vmem %s3, %s451
      $region44: #{_lambda_.6} parent=39 // pred_fallthru
        _
    $region40: #{_lambda_.6} parent=5 // pred_fallthru
      _
  $region6: #{_lambda_.6} parent=0 // loop_footer
    %s13 = sadd.s32 1, %s9
  $region7: #{_lambda_.6} parent=0 // loop_footer_branch
    %8 = sbr.rel target = $region3
  $region8: #{_lambda_.6} parent=0 // loop_exit
    _

// kernel: _lambda_.7
$region0: #{_lambda_.7}
  #allocation0 [shape = 'u32[]', space=smem, size = 0x4, offset = 0x4, fixed_abs, tag = 'smem constant byte address 0x4 - core index']
  #allocation1 [shape = 'u32[144,128]{1,0:T(1,128)}', space=vmem, size = 0x12000, scoped, tag = 'internal scratch']
  %s0 = inlined_call_operand.vmem [shape: f32[6,13,96], index: 0, kind: input, shape index: {}]
  %s1 = inlined_call_operand.vmem [shape: f32[2,96,32], index: 1, kind: input, shape index: {}]
  %s2 = inlined_call_operand.vmem [shape: f32[1,32], index: 2, kind: input, shape index: {}]
  %s3 = inlined_call_operand.vmem [shape: f32[6,12,32], index: 3, kind: output, shape index: {}]
  %s4 = sld [smem:[#allocation0]]
  $region45: #{_lambda_.7} parent=0
    _
  %s6 = ssub.s32 1, %s4
  %s7 = scalar_select 0, %s6, %s4
  loop: start=0, step=1, limit=8
  $region2: #{_lambda_.7} parent=0 // loop_pre_header
    _
  $region3: #{_lambda_.7} parent=0 // loop_header
    %s9 = sphi 0, %s13
    %p10 = scmp.ge.s32.totalorder %s9, 8
    %s19 = sphi 0, %s21
    %s22 = sphi 0, %s19
    %s23 = sphi 0, %s22
    %s39 = sphi 0, %s23
    %s43 = sphi 0, %s43
    %s45 = sphi 0, %s43
    %s46 = sphi 0, %s45
    %s60 = sphi 0, %s46
    %s64 = sphi 0, %s64
    %s66 = sphi 0, %s64
    %s67 = sphi 0, %s66
    %s81 = sphi 0, %s67
    %s87 = sphi 0, %s89
    %s90 = sphi 0, %s87
    %s91 = sphi 0, %s90
    %s107 = sphi 0, %s91
  $region4: #{_lambda_.7} parent=0 // loop_header_branch
    %12 = sbr.rel (%p10) target = $region8
  $region5: #{_lambda_.7} parent=0 // loop_body
    %s14 = ssub.s32 %s9, 1
    %s15 = ssub.s32 %s9, 2
    %s16 = sadd.s32 %s9, 1
    %s17 = ssub.s32 %s9, %s16
    %p18 = scmp.eq.s32.totalorder %s17, 0
    %s20 = sadd.s32 %s19, 1
    %s21 = scalar_select %p18, %s19, %s20
    %p24 = pneg %p18
    %p25 = scmp.eq.s32.totalorder %s9, 5
    %p26 = por %p24, %p25
    %p27 = scmp.ne.s32.totalorder %s19, %s22
    %p28 = scmp.eq.s32.totalorder %s9, 0
    %p29 = por %p27, %p28
    %p30 = scmp.ne.s32.totalorder %s19, %s22
    %p31 = scmp.eq.s32.totalorder %s14, 5
    %p32 = por %p30, %p31
    %p33 = scmp.ne.s32.totalorder %s22, %s23
    %p34 = scmp.eq.s32.totalorder %s14, 0
    %p35 = por %p33, %p34
    %p36 = scmp.ne.s32.totalorder %s22, %s23
    %p37 = scmp.eq.s32.totalorder %s15, 5
    %p38 = por %p36, %p37
    %p40 = scmp.ne.s32.totalorder %s23, %s39
    %p41 = scmp.eq.s32.totalorder %s15, 0
    %p42 = por %p40, %p41
    %s44 = sadd.s32 %s43, 1
    %p47 = scmp.eq.s32.totalorder %s9, 5
    %p48 = scmp.ne.s32.totalorder %s43, %s45
    %p49 = scmp.eq.s32.totalorder %s9, 0
    %p50 = por %p48, %p49
    %p51 = scmp.ne.s32.totalorder %s43, %s45
    %p52 = scmp.eq.s32.totalorder %s14, 5
    %p53 = por %p51, %p52
    %p54 = scmp.ne.s32.totalorder %s45, %s46
    %p55 = scmp.eq.s32.totalorder %s14, 0
    %p56 = por %p54, %p55
    %p57 = scmp.ne.s32.totalorder %s45, %s46
    %p58 = scmp.eq.s32.totalorder %s15, 5
    %p59 = por %p57, %p58
    %p61 = scmp.ne.s32.totalorder %s46, %s60
    %p62 = scmp.eq.s32.totalorder %s15, 0
    %p63 = por %p61, %p62
    %s65 = sadd.s32 %s64, 1
    %p68 = scmp.eq.s32.totalorder %s9, 5
    %p69 = scmp.ne.s32.totalorder %s64, %s66
    %p70 = scmp.eq.s32.totalorder %s9, 0
    %p71 = por %p69, %p70
    %p72 = scmp.ne.s32.totalorder %s64, %s66
    %p73 = scmp.eq.s32.totalorder %s14, 5
    %p74 = por %p72, %p73
    %p75 = scmp.ne.s32.totalorder %s66, %s67
    %p76 = scmp.eq.s32.totalorder %s14, 0
    %p77 = por %p75, %p76
    %p78 = scmp.ne.s32.totalorder %s66, %s67
    %p79 = scmp.eq.s32.totalorder %s15, 5
    %p80 = por %p78, %p79
    %p82 = scmp.ne.s32.totalorder %s67, %s81
    %p83 = scmp.eq.s32.totalorder %s15, 0
    %p84 = por %p82, %p83
    %s85 = ssub.s32 %s9, %s16
    %p86 = scmp.eq.s32.totalorder %s85, 0
    %s88 = sadd.s32 %s87, 1
    %s89 = scalar_select %p86, %s87, %s88
    %p92 = pneg %p86
    %p93 = scmp.eq.s32.totalorder %s9, 5
    %p94 = por %p92, %p93
    %p95 = scmp.ne.s32.totalorder %s87, %s90
    %p96 = scmp.eq.s32.totalorder %s9, 0
    %p97 = por %p95, %p96
    %p98 = scmp.ne.s32.totalorder %s87, %s90
    %p99 = scmp.eq.s32.totalorder %s14, 5
    %p100 = por %p98, %p99
    %p101 = scmp.ne.s32.totalorder %s90, %s91
    %p102 = scmp.eq.s32.totalorder %s14, 0
    %p103 = por %p101, %p102
    %p104 = scmp.ne.s32.totalorder %s90, %s91
    %p105 = scmp.eq.s32.totalorder %s15, 5
    %p106 = por %p104, %p105
    %p108 = scmp.ne.s32.totalorder %s91, %s107
    %p109 = scmp.eq.s32.totalorder %s15, 0
    %p110 = por %p108, %p109
    %p111 = scmp.le.s32.totalorder 1, %s9
    %p112 = scmp.lt.s32.totalorder %s9, 7
    %p113 = pnand %p111, %p112
    %p114 = pneg %p113
    // Predicated region
    $region9: #{_lambda_.7} parent=5 // pred_check
      _
    $region10: #{_lambda_.7} parent=5 // pred_check_branch
      %116 = sbr.rel (%p113) target = $region12
    $region11: #{_lambda_.7} parent=5 // pred_region
      %s117 = ssub.s32 %s9, 1
      // Predicated region
      $region13: #{_lambda_.7} parent=11 // pred_check
        %p118 = pneg %p56
      $region14: #{_lambda_.7} parent=11 // pred_check_branch
        %120 = sbr.rel (%p118) target = $region16
      $region15: #{_lambda_.7} parent=11 // pred_region
        _
      $region16: #{_lambda_.7} parent=11 // pred_fallthru
        _
      // Predicated region
      $region17: #{_lambda_.7} parent=11 // pred_check
        %p121 = pneg %p77
      $region18: #{_lambda_.7} parent=11 // pred_check_branch
        %123 = sbr.rel (%p121) target = $region20
      $region19: #{_lambda_.7} parent=11 // pred_region
        _
      $region20: #{_lambda_.7} parent=11 // pred_fallthru
        _
    $region12: #{_lambda_.7} parent=5 // pred_fallthru
      _
    %p124 = scmp.lt.s32.totalorder %s9, 6
    // Predicated region
    $region21: #{_lambda_.7} parent=5 // pred_check
      %p125 = pneg %p124
    $region22: #{_lambda_.7} parent=5 // pred_check_branch
      %127 = sbr.rel (%p125) target = $region24
    $region23: #{_lambda_.7} parent=5 // pred_region
      // Predicated region
      $region25: #{_lambda_.7} parent=23 // pred_check
        %p128 = pneg %p29
      $region26: #{_lambda_.7} parent=23 // pred_check_branch
        %130 = sbr.rel (%p128) target = $region28
      $region27: #{_lambda_.7} parent=23 // pred_region
        %p131 = scmp.lt.s32.totalorder %s9, 5
        %s132 = scalar_select %p131, %s9, 5
        %s133 = smul.addr %s132, 2
        %s134 = smul.addr %s133, 8
        %s135 = scalar_lea.vmem %s0, %s134
      $region28: #{_lambda_.7} parent=23 // pred_fallthru
        _
    $region24: #{_lambda_.7} parent=5 // pred_fallthru
      _
    %p136 = scmp.le.s32.totalorder 1, %s9
    %p137 = scmp.lt.s32.totalorder %s9, 7
    %p138 = pnand %p136, %p137
    %p139 = pneg %p138
    // Predicated region
    $region29: #{_lambda_.7} parent=5 // pred_check
      _
    $region30: #{_lambda_.7} parent=5 // pred_check_branch
      %141 = sbr.rel (%p138) target = $region32
    $region31: #{_lambda_.7} parent=5 // pred_region
      %s142 = ssub.s32 %s9, 1
      %p143 = scmp.lt.s32.totalorder %s14, 5
      %s144 = scalar_select %p143, %s14, 5
      %s145 = smul.addr %s144, 2
      %s146 = smul.addr %s145, 8
      %s147 = scalar_lea.vmem %s0, %s146
      %p148 = pneg %p35
      %p149 = pneg %p32
      %p150 = pneg %p56
      %p151 = pneg %p53
      %p152 = pneg %p77
      %p153 = pneg %p74
      %p154 = pneg %p103
      %p155 = pneg %p100
      %p156 = scmp.lt.s32.totalorder %s14, 5
      %s157 = scalar_select %p156, %s14, 5
      %s158 = smul.addr %s157, 2
      %s159 = smul.addr %s158, 8
      %s160 = scalar_lea.vmem %s3, %s159
      %p161 = scmp.lt.s32.totalorder %s14, 5
      %s162 = scalar_select %p161, %s14, 5
      %s163 = smul.addr %s162, 2
      %s164 = smul.addr %s163, 8
      %s165 = scalar_lea.vmem %s0, %s164
      %p166 = scmp.lt.s32.totalorder %s14, 5
      %s167 = scalar_select %p166, %s14, 5
      %s168 = smul.addr %s167, 2
      %s169 = smul.addr %s168, 8
      %s170 = scalar_lea.vmem %s3, %s169
      %v172 = vld [vmem:[%s165] sm:$0xff]
      %v173 = vld [vmem:[%s165 + $0x8] sm:$0xf]
      %v174 = vpack.c.bf16 %v173, %v172
      %v175 = vld [vmem:[%s1] sm:$0xff]
      %v176 = vld [vmem:[%s1 + $0x8] sm:$0xff]
      %v177 = vld [vmem:[%s1 + $0x10] sm:$0xff]
      %v178 = vld [vmem:[%s1 + $0x18] sm:$0xff]
      %v179 = vld [vmem:[%s1 + $0x20] sm:$0xff]
      %v180 = vld [vmem:[%s1 + $0x28] sm:$0xff]
      %v181 = vld [vmem:[%s1 + $0x30] sm:$0xff]
      %v182 = vld [vmem:[%s1 + $0x38] sm:$0xff]
      %v183 = vld [vmem:[%s1 + $0x40] sm:$0xff]
      %v184 = vld [vmem:[%s1 + $0x48] sm:$0xff]
      %v185 = vld [vmem:[%s1 + $0x50] sm:$0xff]
      %v186 = vld [vmem:[%s1 + $0x58] sm:$0xff]
      %v187 = vpack.c.bf16 %v176, %v175
      %v188 = vpack.c.bf16 %v178, %v177
      %v189 = vpack.c.bf16 %v180, %v179
      %v190 = vpack.c.bf16 %v182, %v181
      %v191 = vpack.c.bf16 %v184, %v183
      %v192 = vpack.c.bf16 %v186, %v185
      %v193 = vld [vmem:[%s165 + $0x1] sm:$0xff]
      %v194 = vld [vmem:[%s165 + $0x9] sm:$0xf]
      %v195 = vpack.c.bf16 %v194, %v193
      %s196 = scalar_lea.vmem %s1, 96
      %v197 = vld [vmem:[%s196] sm:$0xff]
      %v198 = vld [vmem:[%s196 + $0x8] sm:$0xff]
      %v199 = vld [vmem:[%s196 + $0x10] sm:$0xff]
      %v200 = vld [vmem:[%s196 + $0x18] sm:$0xff]
      %v201 = vld [vmem:[%s196 + $0x20] sm:$0xff]
      %v202 = vld [vmem:[%s196 + $0x28] sm:$0xff]
      %v203 = vld [vmem:[%s196 + $0x30] sm:$0xff]
      %v204 = vld [vmem:[%s196 + $0x38] sm:$0xff]
      %v205 = vld [vmem:[%s196 + $0x40] sm:$0xff]
      %v206 = vld [vmem:[%s196 + $0x48] sm:$0xff]
      %v207 = vld [vmem:[%s196 + $0x50] sm:$0xff]
      %v208 = vld [vmem:[%s196 + $0x58] sm:$0xff]
      %v209 = vpack.c.bf16 %v198, %v197
      %v210 = vpack.c.bf16 %v200, %v199
      %v211 = vpack.c.bf16 %v202, %v201
      %v212 = vpack.c.bf16 %v204, %v203
      %v213 = vpack.c.bf16 %v206, %v205
      %v214 = vpack.c.bf16 %v208, %v207
      %vm215 = vcmask 785408
      %v217 = vsel %vm215, %v195, 0
      %219 = vmatprep.subr.bf16.mxu0 0
      %220 = vmatpush1.bf16.msra.mxu0 %v209
      %221 = vmatprep.subr.bf16.mxu0 0
      %222 = vmatpush1.bf16.msra.mxu0 %v210
      %223 = vmatprep.subr.bf16.mxu0 0
      %224 = vmatpush1.bf16.msra.mxu0 %v211
      %225 = vmatprep.subr.bf16.mxu0 0
      %226 = vmatpush1.bf16.msra.mxu0 %v212
      %227 = vmatprep.subr.bf16.mxu0 0
      %228 = vmatpush1.bf16.msra.mxu0 %v213
      %229 = vmatprep.subr.bf16.mxu0 0
      %230 = vmatpush1.bf16.msra.mxu0 %v214
      %231 = vmatprep.subr.bf16.mxu0 0
      %232 = vmatpush1.bf16.msra.mxu0 0
      %233 = vmatprep.subr.bf16.mxu0 0
      %234 = vmatpush1.bf16.msra.mxu0 0
      %235 = vmatprep.subr.bf16.mxu0 0
      %236 = vmatpush1.bf16.msra.mxu0 0
      %237 = vmatprep.subr.bf16.mxu0 0
      %238 = vmatpush1.bf16.msra.mxu0 0
      %239 = vmatprep.subr.bf16.mxu0 0
      %240 = vmatpush1.bf16.msra.mxu0 0
      %241 = vmatprep.subr.bf16.mxu0 0
      %242 = vmatpush1.bf16.msra.mxu0 0
      %243 = vmatprep.subr.bf16.mxu0 0
      %244 = vmatpush1.bf16.msra.mxu0 0
      %245 = vmatprep.subr.bf16.mxu0 0
      %246 = vmatpush1.bf16.msra.mxu0 0
      %247 = vmatprep.subr.bf16.mxu0 0
      %248 = vmatpush1.bf16.msra.mxu0 0
      %249 = vmatprep.subr.bf16.mxu0 0
      %250 = vmatpush1.bf16.msra.mxu0 0
      %251 = vmatprep.mubr.bf16.mxu0 0
      %252 = vmatmul.mubr.bf16.gmra.mrb[0].mxu0 %v217
      %v253 = vpop.f32.mrb[0].mxu0
      %v254 = vadd.f32 0.0, %v253
      %v255 = vpop.f32.mrb[0].mxu0
      %v256 = vpop.f32.mrb[0].mxu0
      %v257 = vadd.f32 0.0, %v256
      %v258 = vpop.f32.mrb[0].mxu0
      %259 = vdwg.mxu0
      %v261 = vsel %vm215, %v174, 0
      %263 = vmatprep.subr.bf16.mxu0 0
      %264 = vmatpush1.bf16.msra.mxu0 %v187
      %265 = vmatprep.subr.bf16.mxu0 0
      %266 = vmatpush1.bf16.msra.mxu0 %v188
      %267 = vmatprep.subr.bf16.mxu0 0
      %268 = vmatpush1.bf16.msra.mxu0 %v189
      %269 = vmatprep.subr.bf16.mxu0 0
      %270 = vmatpush1.bf16.msra.mxu0 %v190
      %271 = vmatprep.subr.bf16.mxu0 0
      %272 = vmatpush1.bf16.msra.mxu0 %v191
      %273 = vmatprep.subr.bf16.mxu0 0
      %274 = vmatpush1.bf16.msra.mxu0 %v192
      %275 = vmatprep.subr.bf16.mxu0 0
      %276 = vmatpush1.bf16.msra.mxu0 0
      %277 = vmatprep.subr.bf16.mxu0 0
      %278 = vmatpush1.bf16.msra.mxu0 0
      %279 = vmatprep.subr.bf16.mxu0 0
      %280 = vmatpush1.bf16.msra.mxu0 0
      %281 = vmatprep.subr.bf16.mxu0 0
      %282 = vmatpush1.bf16.msra.mxu0 0
      %283 = vmatprep.subr.bf16.mxu0 0
      %284 = vmatpush1.bf16.msra.mxu0 0
      %285 = vmatprep.subr.bf16.mxu0 0
      %286 = vmatpush1.bf16.msra.mxu0 0
      %287 = vmatprep.subr.bf16.mxu0 0
      %288 = vmatpush1.bf16.msra.mxu0 0
      %289 = vmatprep.subr.bf16.mxu0 0
      %290 = vmatpush1.bf16.msra.mxu0 0
      %291 = vmatprep.subr.bf16.mxu0 0
      %292 = vmatpush1.bf16.msra.mxu0 0
      %293 = vmatprep.subr.bf16.mxu0 0
      %294 = vmatpush1.bf16.msra.mxu0 0
      %295 = vmatprep.mubr.bf16.mxu0 0
      %296 = vmatmul.mubr.bf16.gmra.mrb[0].mxu0 %v261
      %v297 = vpop.f32.mrb[0].mxu0
      %v298 = vadd.f32 %v254, %v297
      %v299 = vpop.f32.mrb[0].mxu0
      %v300 = vpop.f32.mrb[0].mxu0
      %v301 = vadd.f32 %v257, %v300
      %v302 = vpop.f32.mrb[0].mxu0
      %303 = vdwg.mxu0
      %v304 = vld [vmem:[%s2] sm:$0x1]
      %v306 = vlaneseq
      %v307 = vshrl.u32 %v306, 7
      %v308 = vsub.s32 0, %v307
      %v309 = vrot.slane %v304, %v308
      %v311 = vadd.f32 %v298, %v309
      %v312 = vadd.f32 %v301, %v309
      %vm313 = vcmp.ge.f32.partialorder %v311, 0.0
      %vm314 = vcmp.ge.f32.partialorder %v312, 0.0
      %v315 = vmul.f32 %v311, 0.2
      %v316 = vmul.f32 %v312, 0.2
      %v317 = vsel %vm313, %v311, %v315
      %v318 = vsel %vm314, %v312, %v316
      %vm319 = vcmask 261120
      %320 = vst.msk [vmem:[%s170] sm:$0xff] %vm319, %v317
      %vm321 = vcmask 257024
      %322 = vst.msk [vmem:[%s170 + $0x8] sm:$0xf] %vm321, %v318
      %p323 = scmp.lt.s32.totalorder %s14, 5
      %s324 = scalar_select %p323, %s14, 5
      %s325 = smul.addr %s324, 2
      %s326 = smul.addr %s325, 8
      %s327 = scalar_lea.vmem %s3, %s326
      // Predicated region
      $region33: #{_lambda_.7} parent=31 // pred_check
        %p328 = pneg %p100
      $region34: #{_lambda_.7} parent=31 // pred_check_branch
        %330 = sbr.rel (%p328) target = $region36
      $region35: #{_lambda_.7} parent=31 // pred_region
        _
      $region36: #{_lambda_.7} parent=31 // pred_fallthru
        _
    $region32: #{_lambda_.7} parent=5 // pred_fallthru
      _
    %p331 = scmp.le.s32.totalorder 2, %s9
    // Predicated region
    $region37: #{_lambda_.7} parent=5 // pred_check
      %p332 = pneg %p331
    $region38: #{_lambda_.7} parent=5 // pred_check_branch
      %334 = sbr.rel (%p332) target = $region40
    $region39: #{_lambda_.7} parent=5 // pred_region
      %s335 = ssub.s32 %s9, 2
      // Predicated region
      $region41: #{_lambda_.7} parent=39 // pred_check
        %p336 = pneg %p106
      $region42: #{_lambda_.7} parent=39 // pred_check_branch
        %338 = sbr.rel (%p336) target = $region44
      $region43: #{_lambda_.7} parent=39 // pred_region
        %p339 = scmp.lt.s32.totalorder %s15, 5
        %s340 = scalar_select %p339, %s15, 5
        %s341 = smul.addr %s340, 2
        %s342 = smul.addr %s341, 8
        %s343 = scalar_lea.vmem %s3, %s342
      $region44: #{_lambda_.7} parent=39 // pred_fallthru
        _
    $region40: #{_lambda_.7} parent=5 // pred_fallthru
      _
  $region6: #{_lambda_.7} parent=0 // loop_footer
    %s13 = sadd.s32 1, %s9
  $region7: #{_lambda_.7} parent=0 // loop_footer_branch
    %8 = sbr.rel target = $region3
  $region8: #{_lambda_.7} parent=0 // loop_exit
    _

// kernel: _lambda_.8
$region0: #{_lambda_.8}
  #allocation0 [shape = 'u32[]', space=smem, size = 0x4, offset = 0x4, fixed_abs, tag = 'smem constant byte address 0x4 - core index']
  #allocation1 [shape = 'u32[144,128]{1,0:T(1,128)}', space=vmem, size = 0x12000, scoped, tag = 'internal scratch']
  %s0 = inlined_call_operand.vmem [shape: f32[6,5,96], index: 0, kind: input, shape index: {}]
  %s1 = inlined_call_operand.vmem [shape: f32[2,96,32], index: 1, kind: input, shape index: {}]
  %s2 = inlined_call_operand.vmem [shape: f32[1,32], index: 2, kind: input, shape index: {}]
  %s3 = inlined_call_operand.vmem [shape: f32[6,4,32], index: 3, kind: output, shape index: {}]
  %s4 = sld [smem:[#allocation0]]
  $region45: #{_lambda_.8} parent=0
    _
  %s6 = ssub.s32 1, %s4
  %s7 = scalar_select 0, %s6, %s4
  loop: start=0, step=1, limit=8
  $region2: #{_lambda_.8} parent=0 // loop_pre_header
    _
  $region3: #{_lambda_.8} parent=0 // loop_header
    %s9 = sphi 0, %s13
    %p10 = scmp.ge.s32.totalorder %s9, 8
    %s19 = sphi 0, %s21
    %s22 = sphi 0, %s19
    %s23 = sphi 0, %s22
    %s39 = sphi 0, %s23
    %s43 = sphi 0, %s43
    %s45 = sphi 0, %s43
    %s46 = sphi 0, %s45
    %s60 = sphi 0, %s46
    %s64 = sphi 0, %s64
    %s66 = sphi 0, %s64
    %s67 = sphi 0, %s66
    %s81 = sphi 0, %s67
    %s87 = sphi 0, %s89
    %s90 = sphi 0, %s87
    %s91 = sphi 0, %s90
    %s107 = sphi 0, %s91
  $region4: #{_lambda_.8} parent=0 // loop_header_branch
    %12 = sbr.rel (%p10) target = $region8
  $region5: #{_lambda_.8} parent=0 // loop_body
    %s14 = ssub.s32 %s9, 1
    %s15 = ssub.s32 %s9, 2
    %s16 = sadd.s32 %s9, 1
    %s17 = ssub.s32 %s9, %s16
    %p18 = scmp.eq.s32.totalorder %s17, 0
    %s20 = sadd.s32 %s19, 1
    %s21 = scalar_select %p18, %s19, %s20
    %p24 = pneg %p18
    %p25 = scmp.eq.s32.totalorder %s9, 5
    %p26 = por %p24, %p25
    %p27 = scmp.ne.s32.totalorder %s19, %s22
    %p28 = scmp.eq.s32.totalorder %s9, 0
    %p29 = por %p27, %p28
    %p30 = scmp.ne.s32.totalorder %s19, %s22
    %p31 = scmp.eq.s32.totalorder %s14, 5
    %p32 = por %p30, %p31
    %p33 = scmp.ne.s32.totalorder %s22, %s23
    %p34 = scmp.eq.s32.totalorder %s14, 0
    %p35 = por %p33, %p34
    %p36 = scmp.ne.s32.totalorder %s22, %s23
    %p37 = scmp.eq.s32.totalorder %s15, 5
    %p38 = por %p36, %p37
    %p40 = scmp.ne.s32.totalorder %s23, %s39
    %p41 = scmp.eq.s32.totalorder %s15, 0
    %p42 = por %p40, %p41
    %s44 = sadd.s32 %s43, 1
    %p47 = scmp.eq.s32.totalorder %s9, 5
    %p48 = scmp.ne.s32.totalorder %s43, %s45
    %p49 = scmp.eq.s32.totalorder %s9, 0
    %p50 = por %p48, %p49
    %p51 = scmp.ne.s32.totalorder %s43, %s45
    %p52 = scmp.eq.s32.totalorder %s14, 5
    %p53 = por %p51, %p52
    %p54 = scmp.ne.s32.totalorder %s45, %s46
    %p55 = scmp.eq.s32.totalorder %s14, 0
    %p56 = por %p54, %p55
    %p57 = scmp.ne.s32.totalorder %s45, %s46
    %p58 = scmp.eq.s32.totalorder %s15, 5
    %p59 = por %p57, %p58
    %p61 = scmp.ne.s32.totalorder %s46, %s60
    %p62 = scmp.eq.s32.totalorder %s15, 0
    %p63 = por %p61, %p62
    %s65 = sadd.s32 %s64, 1
    %p68 = scmp.eq.s32.totalorder %s9, 5
    %p69 = scmp.ne.s32.totalorder %s64, %s66
    %p70 = scmp.eq.s32.totalorder %s9, 0
    %p71 = por %p69, %p70
    %p72 = scmp.ne.s32.totalorder %s64, %s66
    %p73 = scmp.eq.s32.totalorder %s14, 5
    %p74 = por %p72, %p73
    %p75 = scmp.ne.s32.totalorder %s66, %s67
    %p76 = scmp.eq.s32.totalorder %s14, 0
    %p77 = por %p75, %p76
    %p78 = scmp.ne.s32.totalorder %s66, %s67
    %p79 = scmp.eq.s32.totalorder %s15, 5
    %p80 = por %p78, %p79
    %p82 = scmp.ne.s32.totalorder %s67, %s81
    %p83 = scmp.eq.s32.totalorder %s15, 0
    %p84 = por %p82, %p83
    %s85 = ssub.s32 %s9, %s16
    %p86 = scmp.eq.s32.totalorder %s85, 0
    %s88 = sadd.s32 %s87, 1
    %s89 = scalar_select %p86, %s87, %s88
    %p92 = pneg %p86
    %p93 = scmp.eq.s32.totalorder %s9, 5
    %p94 = por %p92, %p93
    %p95 = scmp.ne.s32.totalorder %s87, %s90
    %p96 = scmp.eq.s32.totalorder %s9, 0
    %p97 = por %p95, %p96
    %p98 = scmp.ne.s32.totalorder %s87, %s90
    %p99 = scmp.eq.s32.totalorder %s14, 5
    %p100 = por %p98, %p99
    %p101 = scmp.ne.s32.totalorder %s90, %s91
    %p102 = scmp.eq.s32.totalorder %s14, 0
    %p103 = por %p101, %p102
    %p104 = scmp.ne.s32.totalorder %s90, %s91
    %p105 = scmp.eq.s32.totalorder %s15, 5
    %p106 = por %p104, %p105
    %p108 = scmp.ne.s32.totalorder %s91, %s107
    %p109 = scmp.eq.s32.totalorder %s15, 0
    %p110 = por %p108, %p109
    %p111 = scmp.le.s32.totalorder 1, %s9
    %p112 = scmp.lt.s32.totalorder %s9, 7
    %p113 = pnand %p111, %p112
    %p114 = pneg %p113
    // Predicated region
    $region9: #{_lambda_.8} parent=5 // pred_check
      _
    $region10: #{_lambda_.8} parent=5 // pred_check_branch
      %116 = sbr.rel (%p113) target = $region12
    $region11: #{_lambda_.8} parent=5 // pred_region
      %s117 = ssub.s32 %s9, 1
      // Predicated region
      $region13: #{_lambda_.8} parent=11 // pred_check
        %p118 = pneg %p56
      $region14: #{_lambda_.8} parent=11 // pred_check_branch
        %120 = sbr.rel (%p118) target = $region16
      $region15: #{_lambda_.8} parent=11 // pred_region
        _
      $region16: #{_lambda_.8} parent=11 // pred_fallthru
        _
      // Predicated region
      $region17: #{_lambda_.8} parent=11 // pred_check
        %p121 = pneg %p77
      $region18: #{_lambda_.8} parent=11 // pred_check_branch
        %123 = sbr.rel (%p121) target = $region20
      $region19: #{_lambda_.8} parent=11 // pred_region
        _
      $region20: #{_lambda_.8} parent=11 // pred_fallthru
        _
    $region12: #{_lambda_.8} parent=5 // pred_fallthru
      _
    %p124 = scmp.lt.s32.totalorder %s9, 6
    // Predicated region
    $region21: #{_lambda_.8} parent=5 // pred_check
      %p125 = pneg %p124
    $region22: #{_lambda_.8} parent=5 // pred_check_branch
      %127 = sbr.rel (%p125) target = $region24
    $region23: #{_lambda_.8} parent=5 // pred_region
      // Predicated region
      $region25: #{_lambda_.8} parent=23 // pred_check
        %p128 = pneg %p29
      $region26: #{_lambda_.8} parent=23 // pred_check_branch
        %130 = sbr.rel (%p128) target = $region28
      $region27: #{_lambda_.8} parent=23 // pred_region
        %p131 = scmp.lt.s32.totalorder %s9, 5
        %s132 = scalar_select %p131, %s9, 5
        %s133 = smul.addr %s132, 8
        %s134 = scalar_lea.vmem %s0, %s133
      $region28: #{_lambda_.8} parent=23 // pred_fallthru
        _
    $region24: #{_lambda_.8} parent=5 // pred_fallthru
      _
    %p135 = scmp.le.s32.totalorder 1, %s9
    %p136 = scmp.lt.s32.totalorder %s9, 7
    %p137 = pnand %p135, %p136
    %p138 = pneg %p137
    // Predicated region
    $region29: #{_lambda_.8} parent=5 // pred_check
      _
    $region30: #{_lambda_.8} parent=5 // pred_check_branch
      %140 = sbr.rel (%p137) target = $region32
    $region31: #{_lambda_.8} parent=5 // pred_region
      %s141 = ssub.s32 %s9, 1
      %p142 = scmp.lt.s32.totalorder %s14, 5
      %s143 = scalar_select %p142, %s14, 5
      %s144 = smul.addr %s143, 8
      %s145 = scalar_lea.vmem %s0, %s144
      %p146 = pneg %p35
      %p147 = pneg %p32
      %p148 = pneg %p56
      %p149 = pneg %p53
      %p150 = pneg %p77
      %p151 = pneg %p74
      %p152 = pneg %p103
      %p153 = pneg %p100
      %p154 = scmp.lt.s32.totalorder %s14, 5
      %s155 = scalar_select %p154, %s14, 5
      %s156 = smul.addr %s155, 4
      %s157 = scalar_lea.vmem %s3, %s156
      %p158 = scmp.lt.s32.totalorder %s14, 5
      %s159 = scalar_select %p158, %s14, 5
      %s160 = smul.addr %s159, 8
      %s161 = scalar_lea.vmem %s0, %s160
      %p162 = scmp.lt.s32.totalorder %s14, 5
      %s163 = scalar_select %p162, %s14, 5
      %s164 = smul.addr %s163, 4
      %s165 = scalar_lea.vmem %s3, %s164
      %v167 = vld [vmem:[%s161] sm:$0xf]
      %v168 = vpack.c.bf16 %v167, %v167
      %v169 = vld [vmem:[%s1] sm:$0xff]
      %v170 = vld [vmem:[%s1 + $0x8] sm:$0xff]
      %v171 = vld [vmem:[%s1 + $0x10] sm:$0xff]
      %v172 = vld [vmem:[%s1 + $0x18] sm:$0xff]
      %v173 = vld [vmem:[%s1 + $0x20] sm:$0xff]
      %v174 = vld [vmem:[%s1 + $0x28] sm:$0xff]
      %v175 = vld [vmem:[%s1 + $0x30] sm:$0xff]
      %v176 = vld [vmem:[%s1 + $0x38] sm:$0xff]
      %v177 = vld [vmem:[%s1 + $0x40] sm:$0xff]
      %v178 = vld [vmem:[%s1 + $0x48] sm:$0xff]
      %v179 = vld [vmem:[%s1 + $0x50] sm:$0xff]
      %v180 = vld [vmem:[%s1 + $0x58] sm:$0xff]
      %v181 = vpack.c.bf16 %v170, %v169
      %v182 = vpack.c.bf16 %v172, %v171
      %v183 = vpack.c.bf16 %v174, %v173
      %v184 = vpack.c.bf16 %v176, %v175
      %v185 = vpack.c.bf16 %v178, %v177
      %v186 = vpack.c.bf16 %v180, %v179
      %v187 = vld [vmem:[%s161 + $0x1] sm:$0xf]
      %v188 = vpack.c.bf16 %v187, %v187
      %s189 = scalar_lea.vmem %s1, 96
      %v190 = vld [vmem:[%s189] sm:$0xff]
      %v191 = vld [vmem:[%s189 + $0x8] sm:$0xff]
      %v192 = vld [vmem:[%s189 + $0x10] sm:$0xff]
      %v193 = vld [vmem:[%s189 + $0x18] sm:$0xff]
      %v194 = vld [vmem:[%s189 + $0x20] sm:$0xff]
      %v195 = vld [vmem:[%s189 + $0x28] sm:$0xff]
      %v196 = vld [vmem:[%s189 + $0x30] sm:$0xff]
      %v197 = vld [vmem:[%s189 + $0x38] sm:$0xff]
      %v198 = vld [vmem:[%s189 + $0x40] sm:$0xff]
      %v199 = vld [vmem:[%s189 + $0x48] sm:$0xff]
      %v200 = vld [vmem:[%s189 + $0x50] sm:$0xff]
      %v201 = vld [vmem:[%s189 + $0x58] sm:$0xff]
      %v202 = vpack.c.bf16 %v191, %v190
      %v203 = vpack.c.bf16 %v193, %v192
      %v204 = vpack.c.bf16 %v195, %v194
      %v205 = vpack.c.bf16 %v197, %v196
      %v206 = vpack.c.bf16 %v199, %v198
      %v207 = vpack.c.bf16 %v201, %v200
      %vm208 = vcmask 785408
      %v210 = vsel %vm208, %v188, 0
      %212 = vmatprep.subr.bf16.mxu0 0
      %213 = vmatpush1.bf16.msra.mxu0 %v202
      %214 = vmatprep.subr.bf16.mxu0 0
      %215 = vmatpush1.bf16.msra.mxu0 %v203
      %216 = vmatprep.subr.bf16.mxu0 0
      %217 = vmatpush1.bf16.msra.mxu0 %v204
      %218 = vmatprep.subr.bf16.mxu0 0
      %219 = vmatpush1.bf16.msra.mxu0 %v205
      %220 = vmatprep.subr.bf16.mxu0 0
      %221 = vmatpush1.bf16.msra.mxu0 %v206
      %222 = vmatprep.subr.bf16.mxu0 0
      %223 = vmatpush1.bf16.msra.mxu0 %v207
      %224 = vmatprep.subr.bf16.mxu0 0
      %225 = vmatpush1.bf16.msra.mxu0 0
      %226 = vmatprep.subr.bf16.mxu0 0
      %227 = vmatpush1.bf16.msra.mxu0 0
      %228 = vmatprep.subr.bf16.mxu0 0
      %229 = vmatpush1.bf16.msra.mxu0 0
      %230 = vmatprep.subr.bf16.mxu0 0
      %231 = vmatpush1.bf16.msra.mxu0 0
      %232 = vmatprep.subr.bf16.mxu0 0
      %233 = vmatpush1.bf16.msra.mxu0 0
      %234 = vmatprep.subr.bf16.mxu0 0
      %235 = vmatpush1.bf16.msra.mxu0 0
      %236 = vmatprep.subr.bf16.mxu0 0
      %237 = vmatpush1.bf16.msra.mxu0 0
      %238 = vmatprep.subr.bf16.mxu0 0
      %239 = vmatpush1.bf16.msra.mxu0 0
      %240 = vmatprep.subr.bf16.mxu0 0
      %241 = vmatpush1.bf16.msra.mxu0 0
      %242 = vmatprep.subr.bf16.mxu0 0
      %243 = vmatpush1.bf16.msra.mxu0 0
      %244 = vmatprep.mubr.bf16.mxu0 0
      %245 = vmatmul.mubr.bf16.gmra.mrb[0].mxu0 %v210
      %v246 = vpop.f32.mrb[0].mxu0
      %v247 = vadd.f32 0.0, %v246
      %v248 = vpop.f32.mrb[0].mxu0
      %v249 = vpop.f32.mrb[0].mxu0
      %v250 = vpop.f32.mrb[0].mxu0
      %251 = vdwg.mxu0
      %v253 = vsel %vm208, %v168, 0
      %255 = vmatprep.subr.bf16.mxu0 0
      %256 = vmatpush1.bf16.msra.mxu0 %v181
      %257 = vmatprep.subr.bf16.mxu0 0
      %258 = vmatpush1.bf16.msra.mxu0 %v182
      %259 = vmatprep.subr.bf16.mxu0 0
      %260 = vmatpush1.bf16.msra.mxu0 %v183
      %261 = vmatprep.subr.bf16.mxu0 0
      %262 = vmatpush1.bf16.msra.mxu0 %v184
      %263 = vmatprep.subr.bf16.mxu0 0
      %264 = vmatpush1.bf16.msra.mxu0 %v185
      %265 = vmatprep.subr.bf16.mxu0 0
      %266 = vmatpush1.bf16.msra.mxu0 %v186
      %267 = vmatprep.subr.bf16.mxu0 0
      %268 = vmatpush1.bf16.msra.mxu0 0
      %269 = vmatprep.subr.bf16.mxu0 0
      %270 = vmatpush1.bf16.msra.mxu0 0
      %271 = vmatprep.subr.bf16.mxu0 0
      %272 = vmatpush1.bf16.msra.mxu0 0
      %273 = vmatprep.subr.bf16.mxu0 0
      %274 = vmatpush1.bf16.msra.mxu0 0
      %275 = vmatprep.subr.bf16.mxu0 0
      %276 = vmatpush1.bf16.msra.mxu0 0
      %277 = vmatprep.subr.bf16.mxu0 0
      %278 = vmatpush1.bf16.msra.mxu0 0
      %279 = vmatprep.subr.bf16.mxu0 0
      %280 = vmatpush1.bf16.msra.mxu0 0
      %281 = vmatprep.subr.bf16.mxu0 0
      %282 = vmatpush1.bf16.msra.mxu0 0
      %283 = vmatprep.subr.bf16.mxu0 0
      %284 = vmatpush1.bf16.msra.mxu0 0
      %285 = vmatprep.subr.bf16.mxu0 0
      %286 = vmatpush1.bf16.msra.mxu0 0
      %287 = vmatprep.mubr.bf16.mxu0 0
      %288 = vmatmul.mubr.bf16.gmra.mrb[0].mxu0 %v253
      %v289 = vpop.f32.mrb[0].mxu0
      %v290 = vadd.f32 %v247, %v289
      %v291 = vpop.f32.mrb[0].mxu0
      %v292 = vpop.f32.mrb[0].mxu0
      %v293 = vpop.f32.mrb[0].mxu0
      %294 = vdwg.mxu0
      %v295 = vld [vmem:[%s2] sm:$0x1]
      %v297 = vlaneseq
      %v298 = vshrl.u32 %v297, 7
      %v299 = vsub.s32 0, %v298
      %v300 = vrot.slane %v295, %v299
      %v302 = vadd.f32 %v290, %v300
      %vm303 = vcmp.ge.f32.partialorder %v302, 0.0
      %v304 = vmul.f32 %v302, 0.2
      %v305 = vsel %vm303, %v302, %v304
      %vm306 = vcmask 257024
      %307 = vst.msk [vmem:[%s165] sm:$0xf] %vm306, %v305
      %p308 = scmp.lt.s32.totalorder %s14, 5
      %s309 = scalar_select %p308, %s14, 5
      %s310 = smul.addr %s309, 4
      %s311 = scalar_lea.vmem %s3, %s310
      // Predicated region
      $region33: #{_lambda_.8} parent=31 // pred_check
        %p312 = pneg %p100
      $region34: #{_lambda_.8} parent=31 // pred_check_branch
        %314 = sbr.rel (%p312) target = $region36
      $region35: #{_lambda_.8} parent=31 // pred_region
        _
      $region36: #{_lambda_.8} parent=31 // pred_fallthru
        _
    $region32: #{_lambda_.8} parent=5 // pred_fallthru
      _
    %p315 = scmp.le.s32.totalorder 2, %s9
    // Predicated region
    $region37: #{_lambda_.8} parent=5 // pred_check
      %p316 = pneg %p315
    $region38: #{_lambda_.8} parent=5 // pred_check_branch
      %318 = sbr.rel (%p316) target = $region40
    $region39: #{_lambda_.8} parent=5 // pred_region
      %s319 = ssub.s32 %s9, 2
      // Predicated region
      $region41: #{_lambda_.8} parent=39 // pred_check
        %p320 = pneg %p106
      $region42: #{_lambda_.8} parent=39 // pred_check_branch
        %322 = sbr.rel (%p320) target = $region44
      $region43: #{_lambda_.8} parent=39 // pred_region
        %p323 = scmp.lt.s32.totalorder %s15, 5
        %s324 = scalar_select %p323, %s15, 5
        %s325 = smul.addr %s324, 4
        %s326 = scalar_lea.vmem %s3, %s325
      $region44: #{_lambda_.8} parent=39 // pred_fallthru
        _
    $region40: #{_lambda_.8} parent=5 // pred_fallthru
      _
  $region6: #{_lambda_.8} parent=0 // loop_footer
    %s13 = sadd.s32 1, %s9
  $region7: #{_lambda_.8} parent=0 // loop_footer_branch
    %8 = sbr.rel target = $region3
  $region8: #{_lambda_.8} parent=0 // loop_exit
    _

// kernel: _lambda_.9
$region0: #{_lambda_.9}
  #allocation0 [shape = 'u32[]', space=smem, size = 0x4, offset = 0x4, fixed_abs, tag = 'smem constant byte address 0x4 - core index']
  #allocation1 [shape = 'u32[144,128]{1,0:T(1,128)}', space=vmem, size = 0x12000, scoped, tag = 'internal scratch']
  %s0 = inlined_call_operand.vmem [shape: f32[6,3,96], index: 0, kind: input, shape index: {}]
  %s1 = inlined_call_operand.vmem [shape: f32[2,96,32], index: 1, kind: input, shape index: {}]
  %s2 = inlined_call_operand.vmem [shape: f32[1,32], index: 2, kind: input, shape index: {}]
  %s3 = inlined_call_operand.vmem [shape: f32[6,2,32], index: 3, kind: output, shape index: {}]
  %s4 = sld [smem:[#allocation0]]
  $region45: #{_lambda_.9} parent=0
    _
  %s6 = ssub.s32 1, %s4
  %s7 = scalar_select 0, %s6, %s4
  loop: start=0, step=1, limit=8
  $region2: #{_lambda_.9} parent=0 // loop_pre_header
    _
  $region3: #{_lambda_.9} parent=0 // loop_header
    %s9 = sphi 0, %s13
    %p10 = scmp.ge.s32.totalorder %s9, 8
    %s19 = sphi 0, %s21
    %s22 = sphi 0, %s19
    %s23 = sphi 0, %s22
    %s39 = sphi 0, %s23
    %s43 = sphi 0, %s43
    %s45 = sphi 0, %s43
    %s46 = sphi 0, %s45
    %s60 = sphi 0, %s46
    %s64 = sphi 0, %s64
    %s66 = sphi 0, %s64
    %s67 = sphi 0, %s66
    %s81 = sphi 0, %s67
    %s87 = sphi 0, %s89
    %s90 = sphi 0, %s87
    %s91 = sphi 0, %s90
    %s107 = sphi 0, %s91
  $region4: #{_lambda_.9} parent=0 // loop_header_branch
    %12 = sbr.rel (%p10) target = $region8
  $region5: #{_lambda_.9} parent=0 // loop_body
    %s14 = ssub.s32 %s9, 1
    %s15 = ssub.s32 %s9, 2
    %s16 = sadd.s32 %s9, 1
    %s17 = ssub.s32 %s9, %s16
    %p18 = scmp.eq.s32.totalorder %s17, 0
    %s20 = sadd.s32 %s19, 1
    %s21 = scalar_select %p18, %s19, %s20
    %p24 = pneg %p18
    %p25 = scmp.eq.s32.totalorder %s9, 5
    %p26 = por %p24, %p25
    %p27 = scmp.ne.s32.totalorder %s19, %s22
    %p28 = scmp.eq.s32.totalorder %s9, 0
    %p29 = por %p27, %p28
    %p30 = scmp.ne.s32.totalorder %s19, %s22
    %p31 = scmp.eq.s32.totalorder %s14, 5
    %p32 = por %p30, %p31
    %p33 = scmp.ne.s32.totalorder %s22, %s23
    %p34 = scmp.eq.s32.totalorder %s14, 0
    %p35 = por %p33, %p34
    %p36 = scmp.ne.s32.totalorder %s22, %s23
    %p37 = scmp.eq.s32.totalorder %s15, 5
    %p38 = por %p36, %p37
    %p40 = scmp.ne.s32.totalorder %s23, %s39
    %p41 = scmp.eq.s32.totalorder %s15, 0
    %p42 = por %p40, %p41
    %s44 = sadd.s32 %s43, 1
    %p47 = scmp.eq.s32.totalorder %s9, 5
    %p48 = scmp.ne.s32.totalorder %s43, %s45
    %p49 = scmp.eq.s32.totalorder %s9, 0
    %p50 = por %p48, %p49
    %p51 = scmp.ne.s32.totalorder %s43, %s45
    %p52 = scmp.eq.s32.totalorder %s14, 5
    %p53 = por %p51, %p52
    %p54 = scmp.ne.s32.totalorder %s45, %s46
    %p55 = scmp.eq.s32.totalorder %s14, 0
    %p56 = por %p54, %p55
    %p57 = scmp.ne.s32.totalorder %s45, %s46
    %p58 = scmp.eq.s32.totalorder %s15, 5
    %p59 = por %p57, %p58
    %p61 = scmp.ne.s32.totalorder %s46, %s60
    %p62 = scmp.eq.s32.totalorder %s15, 0
    %p63 = por %p61, %p62
    %s65 = sadd.s32 %s64, 1
    %p68 = scmp.eq.s32.totalorder %s9, 5
    %p69 = scmp.ne.s32.totalorder %s64, %s66
    %p70 = scmp.eq.s32.totalorder %s9, 0
    %p71 = por %p69, %p70
    %p72 = scmp.ne.s32.totalorder %s64, %s66
    %p73 = scmp.eq.s32.totalorder %s14, 5
    %p74 = por %p72, %p73
    %p75 = scmp.ne.s32.totalorder %s66, %s67
    %p76 = scmp.eq.s32.totalorder %s14, 0
    %p77 = por %p75, %p76
    %p78 = scmp.ne.s32.totalorder %s66, %s67
    %p79 = scmp.eq.s32.totalorder %s15, 5
    %p80 = por %p78, %p79
    %p82 = scmp.ne.s32.totalorder %s67, %s81
    %p83 = scmp.eq.s32.totalorder %s15, 0
    %p84 = por %p82, %p83
    %s85 = ssub.s32 %s9, %s16
    %p86 = scmp.eq.s32.totalorder %s85, 0
    %s88 = sadd.s32 %s87, 1
    %s89 = scalar_select %p86, %s87, %s88
    %p92 = pneg %p86
    %p93 = scmp.eq.s32.totalorder %s9, 5
    %p94 = por %p92, %p93
    %p95 = scmp.ne.s32.totalorder %s87, %s90
    %p96 = scmp.eq.s32.totalorder %s9, 0
    %p97 = por %p95, %p96
    %p98 = scmp.ne.s32.totalorder %s87, %s90
    %p99 = scmp.eq.s32.totalorder %s14, 5
    %p100 = por %p98, %p99
    %p101 = scmp.ne.s32.totalorder %s90, %s91
    %p102 = scmp.eq.s32.totalorder %s14, 0
    %p103 = por %p101, %p102
    %p104 = scmp.ne.s32.totalorder %s90, %s91
    %p105 = scmp.eq.s32.totalorder %s15, 5
    %p106 = por %p104, %p105
    %p108 = scmp.ne.s32.totalorder %s91, %s107
    %p109 = scmp.eq.s32.totalorder %s15, 0
    %p110 = por %p108, %p109
    %p111 = scmp.le.s32.totalorder 1, %s9
    %p112 = scmp.lt.s32.totalorder %s9, 7
    %p113 = pnand %p111, %p112
    %p114 = pneg %p113
    // Predicated region
    $region9: #{_lambda_.9} parent=5 // pred_check
      _
    $region10: #{_lambda_.9} parent=5 // pred_check_branch
      %116 = sbr.rel (%p113) target = $region12
    $region11: #{_lambda_.9} parent=5 // pred_region
      %s117 = ssub.s32 %s9, 1
      // Predicated region
      $region13: #{_lambda_.9} parent=11 // pred_check
        %p118 = pneg %p56
      $region14: #{_lambda_.9} parent=11 // pred_check_branch
        %120 = sbr.rel (%p118) target = $region16
      $region15: #{_lambda_.9} parent=11 // pred_region
        _
      $region16: #{_lambda_.9} parent=11 // pred_fallthru
        _
      // Predicated region
      $region17: #{_lambda_.9} parent=11 // pred_check
        %p121 = pneg %p77
      $region18: #{_lambda_.9} parent=11 // pred_check_branch
        %123 = sbr.rel (%p121) target = $region20
      $region19: #{_lambda_.9} parent=11 // pred_region
        _
      $region20: #{_lambda_.9} parent=11 // pred_fallthru
        _
    $region12: #{_lambda_.9} parent=5 // pred_fallthru
      _
    %p124 = scmp.lt.s32.totalorder %s9, 6
    // Predicated region
    $region21: #{_lambda_.9} parent=5 // pred_check
      %p125 = pneg %p124
    $region22: #{_lambda_.9} parent=5 // pred_check_branch
      %127 = sbr.rel (%p125) target = $region24
    $region23: #{_lambda_.9} parent=5 // pred_region
      // Predicated region
      $region25: #{_lambda_.9} parent=23 // pred_check
        %p128 = pneg %p29
      $region26: #{_lambda_.9} parent=23 // pred_check_branch
        %130 = sbr.rel (%p128) target = $region28
      $region27: #{_lambda_.9} parent=23 // pred_region
        %p131 = scmp.lt.s32.totalorder %s9, 5
        %s132 = scalar_select %p131, %s9, 5
        %s133 = smul.addr %s132, 4
        %s134 = scalar_lea.vmem %s0, %s133
      $region28: #{_lambda_.9} parent=23 // pred_fallthru
        _
    $region24: #{_lambda_.9} parent=5 // pred_fallthru
      _
    %p135 = scmp.le.s32.totalorder 1, %s9
    %p136 = scmp.lt.s32.totalorder %s9, 7
    %p137 = pnand %p135, %p136
    %p138 = pneg %p137
    // Predicated region
    $region29: #{_lambda_.9} parent=5 // pred_check
      _
    $region30: #{_lambda_.9} parent=5 // pred_check_branch
      %140 = sbr.rel (%p137) target = $region32
    $region31: #{_lambda_.9} parent=5 // pred_region
      %s141 = ssub.s32 %s9, 1
      %p142 = scmp.lt.s32.totalorder %s14, 5
      %s143 = scalar_select %p142, %s14, 5
      %s144 = smul.addr %s143, 4
      %s145 = scalar_lea.vmem %s0, %s144
      %p146 = pneg %p35
      %p147 = pneg %p32
      %p148 = pneg %p56
      %p149 = pneg %p53
      %p150 = pneg %p77
      %p151 = pneg %p74
      %p152 = pneg %p103
      %p153 = pneg %p100
      %p154 = scmp.lt.s32.totalorder %s14, 5
      %s155 = scalar_select %p154, %s14, 5
      %s156 = smul.addr %s155, 2
      %s157 = scalar_lea.vmem %s3, %s156
      %p158 = scmp.lt.s32.totalorder %s14, 5
      %s159 = scalar_select %p158, %s14, 5
      %s160 = smul.addr %s159, 4
      %s161 = scalar_lea.vmem %s0, %s160
      %p162 = scmp.lt.s32.totalorder %s14, 5
      %s163 = scalar_select %p162, %s14, 5
      %s164 = smul.addr %s163, 2
      %s165 = scalar_lea.vmem %s3, %s164
      %v167 = vld [vmem:[%s161] sm:$0x3]
      %v168 = vpack.c.bf16 %v167, %v167
      %v169 = vld [vmem:[%s1] sm:$0xff]
      %v170 = vld [vmem:[%s1 + $0x8] sm:$0xff]
      %v171 = vld [vmem:[%s1 + $0x10] sm:$0xff]
      %v172 = vld [vmem:[%s1 + $0x18] sm:$0xff]
      %v173 = vld [vmem:[%s1 + $0x20] sm:$0xff]
      %v174 = vld [vmem:[%s1 + $0x28] sm:$0xff]
      %v175 = vld [vmem:[%s1 + $0x30] sm:$0xff]
      %v176 = vld [vmem:[%s1 + $0x38] sm:$0xff]
      %v177 = vld [vmem:[%s1 + $0x40] sm:$0xff]
      %v178 = vld [vmem:[%s1 + $0x48] sm:$0xff]
      %v179 = vld [vmem:[%s1 + $0x50] sm:$0xff]
      %v180 = vld [vmem:[%s1 + $0x58] sm:$0xff]
      %v181 = vpack.c.bf16 %v170, %v169
      %v182 = vpack.c.bf16 %v172, %v171
      %v183 = vpack.c.bf16 %v174, %v173
      %v184 = vpack.c.bf16 %v176, %v175
      %v185 = vpack.c.bf16 %v178, %v177
      %v186 = vpack.c.bf16 %v180, %v179
      %v187 = vld [vmem:[%s161 + $0x1] sm:$0x3]
      %v188 = vpack.c.bf16 %v187, %v187
      %s189 = scalar_lea.vmem %s1, 96
      %v190 = vld [vmem:[%s189] sm:$0xff]
      %v191 = vld [vmem:[%s189 + $0x8] sm:$0xff]
      %v192 = vld [vmem:[%s189 + $0x10] sm:$0xff]
      %v193 = vld [vmem:[%s189 + $0x18] sm:$0xff]
      %v194 = vld [vmem:[%s189 + $0x20] sm:$0xff]
      %v195 = vld [vmem:[%s189 + $0x28] sm:$0xff]
      %v196 = vld [vmem:[%s189 + $0x30] sm:$0xff]
      %v197 = vld [vmem:[%s189 + $0x38] sm:$0xff]
      %v198 = vld [vmem:[%s189 + $0x40] sm:$0xff]
      %v199 = vld [vmem:[%s189 + $0x48] sm:$0xff]
      %v200 = vld [vmem:[%s189 + $0x50] sm:$0xff]
      %v201 = vld [vmem:[%s189 + $0x58] sm:$0xff]
      %v202 = vpack.c.bf16 %v191, %v190
      %v203 = vpack.c.bf16 %v193, %v192
      %v204 = vpack.c.bf16 %v195, %v194
      %v205 = vpack.c.bf16 %v197, %v196
      %v206 = vpack.c.bf16 %v199, %v198
      %v207 = vpack.c.bf16 %v201, %v200
      %vm208 = vcmask 785408
      %v210 = vsel %vm208, %v188, 0
      %212 = vmatprep.subr.bf16.mxu0 0
      %213 = vmatpush1.bf16.msra.mxu0 %v202
      %214 = vmatprep.subr.bf16.mxu0 0
      %215 = vmatpush1.bf16.msra.mxu0 %v203
      %216 = vmatprep.subr.bf16.mxu0 0
      %217 = vmatpush1.bf16.msra.mxu0 %v204
      %218 = vmatprep.subr.bf16.mxu0 0
      %219 = vmatpush1.bf16.msra.mxu0 %v205
      %220 = vmatprep.subr.bf16.mxu0 0
      %221 = vmatpush1.bf16.msra.mxu0 %v206
      %222 = vmatprep.subr.bf16.mxu0 0
      %223 = vmatpush1.bf16.msra.mxu0 %v207
      %224 = vmatprep.subr.bf16.mxu0 0
      %225 = vmatpush1.bf16.msra.mxu0 0
      %226 = vmatprep.subr.bf16.mxu0 0
      %227 = vmatpush1.bf16.msra.mxu0 0
      %228 = vmatprep.subr.bf16.mxu0 0
      %229 = vmatpush1.bf16.msra.mxu0 0
      %230 = vmatprep.subr.bf16.mxu0 0
      %231 = vmatpush1.bf16.msra.mxu0 0
      %232 = vmatprep.subr.bf16.mxu0 0
      %233 = vmatpush1.bf16.msra.mxu0 0
      %234 = vmatprep.subr.bf16.mxu0 0
      %235 = vmatpush1.bf16.msra.mxu0 0
      %236 = vmatprep.subr.bf16.mxu0 0
      %237 = vmatpush1.bf16.msra.mxu0 0
      %238 = vmatprep.subr.bf16.mxu0 0
      %239 = vmatpush1.bf16.msra.mxu0 0
      %240 = vmatprep.subr.bf16.mxu0 0
      %241 = vmatpush1.bf16.msra.mxu0 0
      %242 = vmatprep.subr.bf16.mxu0 0
      %243 = vmatpush1.bf16.msra.mxu0 0
      %244 = vmatprep.mubr.bf16.mxu0 0
      %245 = vmatmul.mubr.bf16.gmra.mrb[0].mxu0 %v210
      %v246 = vpop.f32.mrb[0].mxu0
      %v247 = vadd.f32 0.0, %v246
      %v248 = vpop.f32.mrb[0].mxu0
      %v249 = vpop.f32.mrb[0].mxu0
      %v250 = vpop.f32.mrb[0].mxu0
      %251 = vdwg.mxu0
      %v253 = vsel %vm208, %v168, 0
      %255 = vmatprep.subr.bf16.mxu0 0
      %256 = vmatpush1.bf16.msra.mxu0 %v181
      %257 = vmatprep.subr.bf16.mxu0 0
      %258 = vmatpush1.bf16.msra.mxu0 %v182
      %259 = vmatprep.subr.bf16.mxu0 0
      %260 = vmatpush1.bf16.msra.mxu0 %v183
      %261 = vmatprep.subr.bf16.mxu0 0
      %262 = vmatpush1.bf16.msra.mxu0 %v184
      %263 = vmatprep.subr.bf16.mxu0 0
      %264 = vmatpush1.bf16.msra.mxu0 %v185
      %265 = vmatprep.subr.bf16.mxu0 0
      %266 = vmatpush1.bf16.msra.mxu0 %v186
      %267 = vmatprep.subr.bf16.mxu0 0
      %268 = vmatpush1.bf16.msra.mxu0 0
      %269 = vmatprep.subr.bf16.mxu0 0
      %270 = vmatpush1.bf16.msra.mxu0 0
      %271 = vmatprep.subr.bf16.mxu0 0
      %272 = vmatpush1.bf16.msra.mxu0 0
      %273 = vmatprep.subr.bf16.mxu0 0
      %274 = vmatpush1.bf16.msra.mxu0 0
      %275 = vmatprep.subr.bf16.mxu0 0
      %276 = vmatpush1.bf16.msra.mxu0 0
      %277 = vmatprep.subr.bf16.mxu0 0
      %278 = vmatpush1.bf16.msra.mxu0 0
      %279 = vmatprep.subr.bf16.mxu0 0
      %280 = vmatpush1.bf16.msra.mxu0 0
      %281 = vmatprep.subr.bf16.mxu0 0
      %282 = vmatpush1.bf16.msra.mxu0 0
      %283 = vmatprep.subr.bf16.mxu0 0
      %284 = vmatpush1.bf16.msra.mxu0 0
      %285 = vmatprep.subr.bf16.mxu0 0
      %286 = vmatpush1.bf16.msra.mxu0 0
      %287 = vmatprep.mubr.bf16.mxu0 0
      %288 = vmatmul.mubr.bf16.gmra.mrb[0].mxu0 %v253
      %v289 = vpop.f32.mrb[0].mxu0
      %v290 = vadd.f32 %v247, %v289
      %v291 = vpop.f32.mrb[0].mxu0
      %v292 = vpop.f32.mrb[0].mxu0
      %v293 = vpop.f32.mrb[0].mxu0
      %294 = vdwg.mxu0
      %v295 = vld [vmem:[%s2] sm:$0x1]
      %v297 = vlaneseq
      %v298 = vshrl.u32 %v297, 7
      %v299 = vsub.s32 0, %v298
      %v300 = vrot.slane %v295, %v299
      %v302 = vadd.f32 %v290, %v300
      %vm303 = vcmp.ge.f32.partialorder %v302, 0.0
      %v304 = vmul.f32 %v302, 0.2
      %v305 = vsel %vm303, %v302, %v304
      %vm306 = vcmask 254976
      %307 = vst.msk [vmem:[%s165] sm:$0x3] %vm306, %v305
      %p308 = scmp.lt.s32.totalorder %s14, 5
      %s309 = scalar_select %p308, %s14, 5
      %s310 = smul.addr %s309, 2
      %s311 = scalar_lea.vmem %s3, %s310
      // Predicated region
      $region33: #{_lambda_.9} parent=31 // pred_check
        %p312 = pneg %p100
      $region34: #{_lambda_.9} parent=31 // pred_check_branch
        %314 = sbr.rel (%p312) target = $region36
      $region35: #{_lambda_.9} parent=31 // pred_region
        _
      $region36: #{_lambda_.9} parent=31 // pred_fallthru
        _
    $region32: #{_lambda_.9} parent=5 // pred_fallthru
      _
    %p315 = scmp.le.s32.totalorder 2, %s9
    // Predicated region
    $region37: #{_lambda_.9} parent=5 // pred_check
      %p316 = pneg %p315
    $region38: #{_lambda_.9} parent=5 // pred_check_branch
      %318 = sbr.rel (%p316) target = $region40
    $region39: #{_lambda_.9} parent=5 // pred_region
      %s319 = ssub.s32 %s9, 2
      // Predicated region
      $region41: #{_lambda_.9} parent=39 // pred_check
        %p320 = pneg %p106
      $region42: #{_lambda_.9} parent=39 // pred_check_branch
        %322 = sbr.rel (%p320) target = $region44
      $region43: #{_lambda_.9} parent=39 // pred_region
        %p323 = scmp.lt.s32.totalorder %s15, 5
        %s324 = scalar_select %p323, %s15, 5
        %s325 = smul.addr %s324, 2
        %s326 = scalar_lea.vmem %s3, %s325
      $region44: #{_lambda_.9} parent=39 // pred_fallthru
        _
    $region40: #{_lambda_.9} parent=5 // pred_fallthru
      _
  $region6: #{_lambda_.9} parent=0 // loop_footer
    %s13 = sadd.s32 1, %s9
  $region7: #{_lambda_.9} parent=0 // loop_footer_branch
    %8 = sbr.rel target = $region3
  $region8: #{_lambda_.9} parent=0 // loop_exit
    _

// kernel: _lambda_.10
$region0: #{_lambda_.10}
  #allocation0 [shape = 'u32[]', space=smem, size = 0x4, offset = 0x4, fixed_abs, tag = 'smem constant byte address 0x4 - core index']
  #allocation1 [shape = 'u32[144,128]{1,0:T(1,128)}', space=vmem, size = 0x12000, scoped, tag = 'internal scratch']
  %s0 = inlined_call_operand.vmem [shape: f32[6,6,32], index: 0, kind: input, shape index: {}]
  %s1 = inlined_call_operand.vmem [shape: f32[5,32,32], index: 1, kind: input, shape index: {}]
  %s2 = inlined_call_operand.vmem [shape: f32[1,32], index: 2, kind: input, shape index: {}]
  %s3 = inlined_call_operand.vmem [shape: f32[6,2,32], index: 3, kind: output, shape index: {}]
  %s4 = sld [smem:[#allocation0]]
  $region45: #{_lambda_.10} parent=0
    _
  %s6 = ssub.s32 1, %s4
  %s7 = scalar_select 0, %s6, %s4
  loop: start=0, step=1, limit=8
  $region2: #{_lambda_.10} parent=0 // loop_pre_header
    _
  $region3: #{_lambda_.10} parent=0 // loop_header
    %s9 = sphi 0, %s13
    %p10 = scmp.ge.s32.totalorder %s9, 8
    %s19 = sphi 0, %s21
    %s22 = sphi 0, %s19
    %s23 = sphi 0, %s22
    %s39 = sphi 0, %s23
    %s43 = sphi 0, %s43
    %s45 = sphi 0, %s43
    %s46 = sphi 0, %s45
    %s60 = sphi 0, %s46
    %s64 = sphi 0, %s64
    %s66 = sphi 0, %s64
    %s67 = sphi 0, %s66
    %s81 = sphi 0, %s67
    %s87 = sphi 0, %s89
    %s90 = sphi 0, %s87
    %s91 = sphi 0, %s90
    %s107 = sphi 0, %s91
  $region4: #{_lambda_.10} parent=0 // loop_header_branch
    %12 = sbr.rel (%p10) target = $region8
  $region5: #{_lambda_.10} parent=0 // loop_body
    %s14 = ssub.s32 %s9, 1
    %s15 = ssub.s32 %s9, 2
    %s16 = sadd.s32 %s9, 1
    %s17 = ssub.s32 %s9, %s16
    %p18 = scmp.eq.s32.totalorder %s17, 0
    %s20 = sadd.s32 %s19, 1
    %s21 = scalar_select %p18, %s19, %s20
    %p24 = pneg %p18
    %p25 = scmp.eq.s32.totalorder %s9, 5
    %p26 = por %p24, %p25
    %p27 = scmp.ne.s32.totalorder %s19, %s22
    %p28 = scmp.eq.s32.totalorder %s9, 0
    %p29 = por %p27, %p28
    %p30 = scmp.ne.s32.totalorder %s19, %s22
    %p31 = scmp.eq.s32.totalorder %s14, 5
    %p32 = por %p30, %p31
    %p33 = scmp.ne.s32.totalorder %s22, %s23
    %p34 = scmp.eq.s32.totalorder %s14, 0
    %p35 = por %p33, %p34
    %p36 = scmp.ne.s32.totalorder %s22, %s23
    %p37 = scmp.eq.s32.totalorder %s15, 5
    %p38 = por %p36, %p37
    %p40 = scmp.ne.s32.totalorder %s23, %s39
    %p41 = scmp.eq.s32.totalorder %s15, 0
    %p42 = por %p40, %p41
    %s44 = sadd.s32 %s43, 1
    %p47 = scmp.eq.s32.totalorder %s9, 5
    %p48 = scmp.ne.s32.totalorder %s43, %s45
    %p49 = scmp.eq.s32.totalorder %s9, 0
    %p50 = por %p48, %p49
    %p51 = scmp.ne.s32.totalorder %s43, %s45
    %p52 = scmp.eq.s32.totalorder %s14, 5
    %p53 = por %p51, %p52
    %p54 = scmp.ne.s32.totalorder %s45, %s46
    %p55 = scmp.eq.s32.totalorder %s14, 0
    %p56 = por %p54, %p55
    %p57 = scmp.ne.s32.totalorder %s45, %s46
    %p58 = scmp.eq.s32.totalorder %s15, 5
    %p59 = por %p57, %p58
    %p61 = scmp.ne.s32.totalorder %s46, %s60
    %p62 = scmp.eq.s32.totalorder %s15, 0
    %p63 = por %p61, %p62
    %s65 = sadd.s32 %s64, 1
    %p68 = scmp.eq.s32.totalorder %s9, 5
    %p69 = scmp.ne.s32.totalorder %s64, %s66
    %p70 = scmp.eq.s32.totalorder %s9, 0
    %p71 = por %p69, %p70
    %p72 = scmp.ne.s32.totalorder %s64, %s66
    %p73 = scmp.eq.s32.totalorder %s14, 5
    %p74 = por %p72, %p73
    %p75 = scmp.ne.s32.totalorder %s66, %s67
    %p76 = scmp.eq.s32.totalorder %s14, 0
    %p77 = por %p75, %p76
    %p78 = scmp.ne.s32.totalorder %s66, %s67
    %p79 = scmp.eq.s32.totalorder %s15, 5
    %p80 = por %p78, %p79
    %p82 = scmp.ne.s32.totalorder %s67, %s81
    %p83 = scmp.eq.s32.totalorder %s15, 0
    %p84 = por %p82, %p83
    %s85 = ssub.s32 %s9, %s16
    %p86 = scmp.eq.s32.totalorder %s85, 0
    %s88 = sadd.s32 %s87, 1
    %s89 = scalar_select %p86, %s87, %s88
    %p92 = pneg %p86
    %p93 = scmp.eq.s32.totalorder %s9, 5
    %p94 = por %p92, %p93
    %p95 = scmp.ne.s32.totalorder %s87, %s90
    %p96 = scmp.eq.s32.totalorder %s9, 0
    %p97 = por %p95, %p96
    %p98 = scmp.ne.s32.totalorder %s87, %s90
    %p99 = scmp.eq.s32.totalorder %s14, 5
    %p100 = por %p98, %p99
    %p101 = scmp.ne.s32.totalorder %s90, %s91
    %p102 = scmp.eq.s32.totalorder %s14, 0
    %p103 = por %p101, %p102
    %p104 = scmp.ne.s32.totalorder %s90, %s91
    %p105 = scmp.eq.s32.totalorder %s15, 5
    %p106 = por %p104, %p105
    %p108 = scmp.ne.s32.totalorder %s91, %s107
    %p109 = scmp.eq.s32.totalorder %s15, 0
    %p110 = por %p108, %p109
    %p111 = scmp.le.s32.totalorder 1, %s9
    %p112 = scmp.lt.s32.totalorder %s9, 7
    %p113 = pnand %p111, %p112
    %p114 = pneg %p113
    // Predicated region
    $region9: #{_lambda_.10} parent=5 // pred_check
      _
    $region10: #{_lambda_.10} parent=5 // pred_check_branch
      %116 = sbr.rel (%p113) target = $region12
    $region11: #{_lambda_.10} parent=5 // pred_region
      %s117 = ssub.s32 %s9, 1
      // Predicated region
      $region13: #{_lambda_.10} parent=11 // pred_check
        %p118 = pneg %p56
      $region14: #{_lambda_.10} parent=11 // pred_check_branch
        %120 = sbr.rel (%p118) target = $region16
      $region15: #{_lambda_.10} parent=11 // pred_region
        _
      $region16: #{_lambda_.10} parent=11 // pred_fallthru
        _
      // Predicated region
      $region17: #{_lambda_.10} parent=11 // pred_check
        %p121 = pneg %p77
      $region18: #{_lambda_.10} parent=11 // pred_check_branch
        %123 = sbr.rel (%p121) target = $region20
      $region19: #{_lambda_.10} parent=11 // pred_region
        _
      $region20: #{_lambda_.10} parent=11 // pred_fallthru
        _
    $region12: #{_lambda_.10} parent=5 // pred_fallthru
      _
    %p124 = scmp.lt.s32.totalorder %s9, 6
    // Predicated region
    $region21: #{_lambda_.10} parent=5 // pred_check
      %p125 = pneg %p124
    $region22: #{_lambda_.10} parent=5 // pred_check_branch
      %127 = sbr.rel (%p125) target = $region24
    $region23: #{_lambda_.10} parent=5 // pred_region
      // Predicated region
      $region25: #{_lambda_.10} parent=23 // pred_check
        %p128 = pneg %p29
      $region26: #{_lambda_.10} parent=23 // pred_check_branch
        %130 = sbr.rel (%p128) target = $region28
      $region27: #{_lambda_.10} parent=23 // pred_region
        %p131 = scmp.lt.s32.totalorder %s9, 5
        %s132 = scalar_select %p131, %s9, 5
        %s133 = smul.addr %s132, 8
        %s134 = scalar_lea.vmem %s0, %s133
      $region28: #{_lambda_.10} parent=23 // pred_fallthru
        _
    $region24: #{_lambda_.10} parent=5 // pred_fallthru
      _
    %p135 = scmp.le.s32.totalorder 1, %s9
    %p136 = scmp.lt.s32.totalorder %s9, 7
    %p137 = pnand %p135, %p136
    %p138 = pneg %p137
    // Predicated region
    $region29: #{_lambda_.10} parent=5 // pred_check
      _
    $region30: #{_lambda_.10} parent=5 // pred_check_branch
      %140 = sbr.rel (%p137) target = $region32
    $region31: #{_lambda_.10} parent=5 // pred_region
      %s141 = ssub.s32 %s9, 1
      %p142 = scmp.lt.s32.totalorder %s14, 5
      %s143 = scalar_select %p142, %s14, 5
      %s144 = smul.addr %s143, 8
      %s145 = scalar_lea.vmem %s0, %s144
      %p146 = pneg %p35
      %p147 = pneg %p32
      %p148 = pneg %p56
      %p149 = pneg %p53
      %p150 = pneg %p77
      %p151 = pneg %p74
      %p152 = pneg %p103
      %p153 = pneg %p100
      %p154 = scmp.lt.s32.totalorder %s14, 5
      %s155 = scalar_select %p154, %s14, 5
      %s156 = smul.addr %s155, 2
      %s157 = scalar_lea.vmem %s3, %s156
      %p158 = scmp.lt.s32.totalorder %s14, 5
      %s159 = scalar_select %p158, %s14, 5
      %s160 = smul.addr %s159, 8
      %s161 = scalar_lea.vmem %s0, %s160
      %p162 = scmp.lt.s32.totalorder %s14, 5
      %s163 = scalar_select %p162, %s14, 5
      %s164 = smul.addr %s163, 2
      %s165 = scalar_lea.vmem %s3, %s164
      %v167 = vld [vmem:[%s161] sm:$0x3]
      %v168 = vpack.c.bf16 %v167, %v167
      %v169 = vld [vmem:[%s1] sm:$0xff]
      %v170 = vld [vmem:[%s1 + $0x8] sm:$0xff]
      %v171 = vld [vmem:[%s1 + $0x10] sm:$0xff]
      %v172 = vld [vmem:[%s1 + $0x18] sm:$0xff]
      %v173 = vpack.c.bf16 %v170, %v169
      %v174 = vpack.c.bf16 %v172, %v171
      %v175 = vld [vmem:[%s161 + $0x1] sm:$0x3]
      %v176 = vpack.c.bf16 %v175, %v175
      %s177 = scalar_lea.vmem %s1, 32
      %v178 = vld [vmem:[%s177] sm:$0xff]
      %v179 = vld [vmem:[%s177 + $0x8] sm:$0xff]
      %v180 = vld [vmem:[%s177 + $0x10] sm:$0xff]
      %v181 = vld [vmem:[%s177 + $0x18] sm:$0xff]
      %v182 = vpack.c.bf16 %v179, %v178
      %v183 = vpack.c.bf16 %v181, %v180
      %vm184 = vcmask 261120
      %v186 = vsel %vm184, %v176, 0
      %188 = vmatprep.subr.bf16.mxu0 0
      %189 = vmatpush1.bf16.msra.mxu0 %v182
      %190 = vmatprep.subr.bf16.mxu0 0
      %191 = vmatpush1.bf16.msra.mxu0 %v183
      %192 = vmatprep.subr.bf16.mxu0 0
      %193 = vmatpush1.bf16.msra.mxu0 0
      %194 = vmatprep.subr.bf16.mxu0 0
      %195 = vmatpush1.bf16.msra.mxu0 0
      %196 = vmatprep.subr.bf16.mxu0 0
      %197 = vmatpush1.bf16.msra.mxu0 0
      %198 = vmatprep.subr.bf16.mxu0 0
      %199 = vmatpush1.bf16.msra.mxu0 0
      %200 = vmatprep.subr.bf16.mxu0 0
      %201 = vmatpush1.bf16.msra.mxu0 0
      %202 = vmatprep.subr.bf16.mxu0 0
      %203 = vmatpush1.bf16.msra.mxu0 0
      %204 = vmatprep.subr.bf16.mxu0 0
      %205 = vmatpush1.bf16.msra.mxu0 0
      %206 = vmatprep.subr.bf16.mxu0 0
      %207 = vmatpush1.bf16.msra.mxu0 0
      %208 = vmatprep.subr.bf16.mxu0 0
      %209 = vmatpush1.bf16.msra.mxu0 0
      %210 = vmatprep.subr.bf16.mxu0 0
      %211 = vmatpush1.bf16.msra.mxu0 0
      %212 = vmatprep.subr.bf16.mxu0 0
      %213 = vmatpush1.bf16.msra.mxu0 0
      %214 = vmatprep.subr.bf16.mxu0 0
      %215 = vmatpush1.bf16.msra.mxu0 0
      %216 = vmatprep.subr.bf16.mxu0 0
      %217 = vmatpush1.bf16.msra.mxu0 0
      %218 = vmatprep.subr.bf16.mxu0 0
      %219 = vmatpush1.bf16.msra.mxu0 0
      %220 = vmatprep.mubr.bf16.mxu0 0
      %221 = vmatmul.mubr.bf16.gmra.mrb[0].mxu0 %v186
      %v222 = vpop.f32.mrb[0].mxu0
      %v223 = vadd.f32 0.0, %v222
      %v224 = vpop.f32.mrb[0].mxu0
      %v225 = vpop.f32.mrb[0].mxu0
      %v226 = vpop.f32.mrb[0].mxu0
      %227 = vdwg.mxu0
      %v229 = vsel %vm184, %v168, 0
      %231 = vmatprep.subr.bf16.mxu0 0
      %232 = vmatpush1.bf16.msra.mxu0 %v173
      %233 = vmatprep.subr.bf16.mxu0 0
      %234 = vmatpush1.bf16.msra.mxu0 %v174
      %235 = vmatprep.subr.bf16.mxu0 0
      %236 = vmatpush1.bf16.msra.mxu0 0
      %237 = vmatprep.subr.bf16.mxu0 0
      %238 = vmatpush1.bf16.msra.mxu0 0
      %239 = vmatprep.subr.bf16.mxu0 0
      %240 = vmatpush1.bf16.msra.mxu0 0
      %241 = vmatprep.subr.bf16.mxu0 0
      %242 = vmatpush1.bf16.msra.mxu0 0
      %243 = vmatprep.subr.bf16.mxu0 0
      %244 = vmatpush1.bf16.msra.mxu0 0
      %245 = vmatprep.subr.bf16.mxu0 0
      %246 = vmatpush1.bf16.msra.mxu0 0
      %247 = vmatprep.subr.bf16.mxu0 0
      %248 = vmatpush1.bf16.msra.mxu0 0
      %249 = vmatprep.subr.bf16.mxu0 0
      %250 = vmatpush1.bf16.msra.mxu0 0
      %251 = vmatprep.subr.bf16.mxu0 0
      %252 = vmatpush1.bf16.msra.mxu0 0
      %253 = vmatprep.subr.bf16.mxu0 0
      %254 = vmatpush1.bf16.msra.mxu0 0
      %255 = vmatprep.subr.bf16.mxu0 0
      %256 = vmatpush1.bf16.msra.mxu0 0
      %257 = vmatprep.subr.bf16.mxu0 0
      %258 = vmatpush1.bf16.msra.mxu0 0
      %259 = vmatprep.subr.bf16.mxu0 0
      %260 = vmatpush1.bf16.msra.mxu0 0
      %261 = vmatprep.subr.bf16.mxu0 0
      %262 = vmatpush1.bf16.msra.mxu0 0
      %263 = vmatprep.mubr.bf16.mxu0 0
      %264 = vmatmul.mubr.bf16.gmra.mrb[0].mxu0 %v229
      %v265 = vpop.f32.mrb[0].mxu0
      %v266 = vadd.f32 %v223, %v265
      %v267 = vpop.f32.mrb[0].mxu0
      %v268 = vpop.f32.mrb[0].mxu0
      %v269 = vpop.f32.mrb[0].mxu0
      %270 = vdwg.mxu0
      %v271 = vld [vmem:[%s161 + $0x2] sm:$0x3]
      %v272 = vpack.c.bf16 %v271, %v271
      %s273 = scalar_lea.vmem %s1, 64
      %v274 = vld [vmem:[%s273] sm:$0xff]
      %v275 = vld [vmem:[%s273 + $0x8] sm:$0xff]
      %v276 = vld [vmem:[%s273 + $0x10] sm:$0xff]
      %v277 = vld [vmem:[%s273 + $0x18] sm:$0xff]
      %v278 = vpack.c.bf16 %v275, %v274
      %v279 = vpack.c.bf16 %v277, %v276
      %v281 = vsel %vm184, %v272, 0
      %283 = vmatprep.subr.bf16.mxu0 0
      %284 = vmatpush1.bf16.msra.mxu0 %v278
      %285 = vmatprep.subr.bf16.mxu0 0
      %286 = vmatpush1.bf16.msra.mxu0 %v279
      %287 = vmatprep.subr.bf16.mxu0 0
      %288 = vmatpush1.bf16.msra.mxu0 0
      %289 = vmatprep.subr.bf16.mxu0 0
      %290 = vmatpush1.bf16.msra.mxu0 0
      %291 = vmatprep.subr.bf16.mxu0 0
      %292 = vmatpush1.bf16.msra.mxu0 0
      %293 = vmatprep.subr.bf16.mxu0 0
      %294 = vmatpush1.bf16.msra.mxu0 0
      %295 = vmatprep.subr.bf16.mxu0 0
      %296 = vmatpush1.bf16.msra.mxu0 0
      %297 = vmatprep.subr.bf16.mxu0 0
      %298 = vmatpush1.bf16.msra.mxu0 0
      %299 = vmatprep.subr.bf16.mxu0 0
      %300 = vmatpush1.bf16.msra.mxu0 0
      %301 = vmatprep.subr.bf16.mxu0 0
      %302 = vmatpush1.bf16.msra.mxu0 0
      %303 = vmatprep.subr.bf16.mxu0 0
      %304 = vmatpush1.bf16.msra.mxu0 0
      %305 = vmatprep.subr.bf16.mxu0 0
      %306 = vmatpush1.bf16.msra.mxu0 0
      %307 = vmatprep.subr.bf16.mxu0 0
      %308 = vmatpush1.bf16.msra.mxu0 0
      %309 = vmatprep.subr.bf16.mxu0 0
      %310 = vmatpush1.bf16.msra.mxu0 0
      %311 = vmatprep.subr.bf16.mxu0 0
      %312 = vmatpush1.bf16.msra.mxu0 0
      %313 = vmatprep.subr.bf16.mxu0 0
      %314 = vmatpush1.bf16.msra.mxu0 0
      %315 = vmatprep.mubr.bf16.mxu0 0
      %316 = vmatmul.mubr.bf16.gmra.mrb[0].mxu0 %v281
      %v317 = vpop.f32.mrb[0].mxu0
      %v318 = vadd.f32 0.0, %v317
      %v319 = vpop.f32.mrb[0].mxu0
      %v320 = vpop.f32.mrb[0].mxu0
      %v321 = vpop.f32.mrb[0].mxu0
      %322 = vdwg.mxu0
      %v323 = vadd.f32 %v266, %v318
      %v324 = vld [vmem:[%s161 + $0x3] sm:$0x3]
      %v325 = vpack.c.bf16 %v324, %v324
      %s326 = scalar_lea.vmem %s1, 96
      %v327 = vld [vmem:[%s326] sm:$0xff]
      %v328 = vld [vmem:[%s326 + $0x8] sm:$0xff]
      %v329 = vld [vmem:[%s326 + $0x10] sm:$0xff]
      %v330 = vld [vmem:[%s326 + $0x18] sm:$0xff]
      %v331 = vpack.c.bf16 %v328, %v327
      %v332 = vpack.c.bf16 %v330, %v329
      %v334 = vsel %vm184, %v325, 0
      %336 = vmatprep.subr.bf16.mxu0 0
      %337 = vmatpush1.bf16.msra.mxu0 %v331
      %338 = vmatprep.subr.bf16.mxu0 0
      %339 = vmatpush1.bf16.msra.mxu0 %v332
      %340 = vmatprep.subr.bf16.mxu0 0
      %341 = vmatpush1.bf16.msra.mxu0 0
      %342 = vmatprep.subr.bf16.mxu0 0
      %343 = vmatpush1.bf16.msra.mxu0 0
      %344 = vmatprep.subr.bf16.mxu0 0
      %345 = vmatpush1.bf16.msra.mxu0 0
      %346 = vmatprep.subr.bf16.mxu0 0
      %347 = vmatpush1.bf16.msra.mxu0 0
      %348 = vmatprep.subr.bf16.mxu0 0
      %349 = vmatpush1.bf16.msra.mxu0 0
      %350 = vmatprep.subr.bf16.mxu0 0
      %351 = vmatpush1.bf16.msra.mxu0 0
      %352 = vmatprep.subr.bf16.mxu0 0
      %353 = vmatpush1.bf16.msra.mxu0 0
      %354 = vmatprep.subr.bf16.mxu0 0
      %355 = vmatpush1.bf16.msra.mxu0 0
      %356 = vmatprep.subr.bf16.mxu0 0
      %357 = vmatpush1.bf16.msra.mxu0 0
      %358 = vmatprep.subr.bf16.mxu0 0
      %359 = vmatpush1.bf16.msra.mxu0 0
      %360 = vmatprep.subr.bf16.mxu0 0
      %361 = vmatpush1.bf16.msra.mxu0 0
      %362 = vmatprep.subr.bf16.mxu0 0
      %363 = vmatpush1.bf16.msra.mxu0 0
      %364 = vmatprep.subr.bf16.mxu0 0
      %365 = vmatpush1.bf16.msra.mxu0 0
      %366 = vmatprep.subr.bf16.mxu0 0
      %367 = vmatpush1.bf16.msra.mxu0 0
      %368 = vmatprep.mubr.bf16.mxu0 0
      %369 = vmatmul.mubr.bf16.gmra.mrb[0].mxu0 %v334
      %v370 = vpop.f32.mrb[0].mxu0
      %v371 = vadd.f32 0.0, %v370
      %v372 = vpop.f32.mrb[0].mxu0
      %v373 = vpop.f32.mrb[0].mxu0
      %v374 = vpop.f32.mrb[0].mxu0
      %375 = vdwg.mxu0
      %v376 = vadd.f32 %v323, %v371
      %v377 = vld [vmem:[%s161 + $0x4] sm:$0x3]
      %v378 = vpack.c.bf16 %v377, %v377
      %s379 = scalar_lea.vmem %s1, 128
      %v380 = vld [vmem:[%s379] sm:$0xff]
      %v381 = vld [vmem:[%s379 + $0x8] sm:$0xff]
      %v382 = vld [vmem:[%s379 + $0x10] sm:$0xff]
      %v383 = vld [vmem:[%s379 + $0x18] sm:$0xff]
      %v384 = vpack.c.bf16 %v381, %v380
      %v385 = vpack.c.bf16 %v383, %v382
      %v387 = vsel %vm184, %v378, 0
      %389 = vmatprep.subr.bf16.mxu0 0
      %390 = vmatpush1.bf16.msra.mxu0 %v384
      %391 = vmatprep.subr.bf16.mxu0 0
      %392 = vmatpush1.bf16.msra.mxu0 %v385
      %393 = vmatprep.subr.bf16.mxu0 0
      %394 = vmatpush1.bf16.msra.mxu0 0
      %395 = vmatprep.subr.bf16.mxu0 0
      %396 = vmatpush1.bf16.msra.mxu0 0
      %397 = vmatprep.subr.bf16.mxu0 0
      %398 = vmatpush1.bf16.msra.mxu0 0
      %399 = vmatprep.subr.bf16.mxu0 0
      %400 = vmatpush1.bf16.msra.mxu0 0
      %401 = vmatprep.subr.bf16.mxu0 0
      %402 = vmatpush1.bf16.msra.mxu0 0
      %403 = vmatprep.subr.bf16.mxu0 0
      %404 = vmatpush1.bf16.msra.mxu0 0
      %405 = vmatprep.subr.bf16.mxu0 0
      %406 = vmatpush1.bf16.msra.mxu0 0
      %407 = vmatprep.subr.bf16.mxu0 0
      %408 = vmatpush1.bf16.msra.mxu0 0
      %409 = vmatprep.subr.bf16.mxu0 0
      %410 = vmatpush1.bf16.msra.mxu0 0
      %411 = vmatprep.subr.bf16.mxu0 0
      %412 = vmatpush1.bf16.msra.mxu0 0
      %413 = vmatprep.subr.bf16.mxu0 0
      %414 = vmatpush1.bf16.msra.mxu0 0
      %415 = vmatprep.subr.bf16.mxu0 0
      %416 = vmatpush1.bf16.msra.mxu0 0
      %417 = vmatprep.subr.bf16.mxu0 0
      %418 = vmatpush1.bf16.msra.mxu0 0
      %419 = vmatprep.subr.bf16.mxu0 0
      %420 = vmatpush1.bf16.msra.mxu0 0
      %421 = vmatprep.mubr.bf16.mxu0 0
      %422 = vmatmul.mubr.bf16.gmra.mrb[0].mxu0 %v387
      %v423 = vpop.f32.mrb[0].mxu0
      %v424 = vadd.f32 0.0, %v423
      %v425 = vpop.f32.mrb[0].mxu0
      %v426 = vpop.f32.mrb[0].mxu0
      %v427 = vpop.f32.mrb[0].mxu0
      %428 = vdwg.mxu0
      %v429 = vadd.f32 %v376, %v424
      %v430 = vld [vmem:[%s2] sm:$0x1]
      %v432 = vlaneseq
      %v433 = vshrl.u32 %v432, 7
      %v434 = vsub.s32 0, %v433
      %v435 = vrot.slane %v430, %v434
      %v437 = vadd.f32 %v429, %v435
      %vm438 = vcmp.ge.f32.partialorder %v437, 0.0
      %v439 = vmul.f32 %v437, 0.2
      %v440 = vsel %vm438, %v437, %v439
      %vm441 = vcmask 254976
      %442 = vst.msk [vmem:[%s165] sm:$0x3] %vm441, %v440
      %p443 = scmp.lt.s32.totalorder %s14, 5
      %s444 = scalar_select %p443, %s14, 5
      %s445 = smul.addr %s444, 2
      %s446 = scalar_lea.vmem %s3, %s445
      // Predicated region
      $region33: #{_lambda_.10} parent=31 // pred_check
        %p447 = pneg %p100
      $region34: #{_lambda_.10} parent=31 // pred_check_branch
        %449 = sbr.rel (%p447) target = $region36
      $region35: #{_lambda_.10} parent=31 // pred_region
        _
      $region36: #{_lambda_.10} parent=31 // pred_fallthru
        _
    $region32: #{_lambda_.10} parent=5 // pred_fallthru
      _
    %p450 = scmp.le.s32.totalorder 2, %s9
    // Predicated region
    $region37: #{_lambda_.10} parent=5 // pred_check
      %p451 = pneg %p450
    $region38: #{_lambda_.10} parent=5 // pred_check_branch
      %453 = sbr.rel (%p451) target = $region40
    $region39: #{_lambda_.10} parent=5 // pred_region
      %s454 = ssub.s32 %s9, 2
      // Predicated region
      $region41: #{_lambda_.10} parent=39 // pred_check
        %p455 = pneg %p106
      $region42: #{_lambda_.10} parent=39 // pred_check_branch
        %457 = sbr.rel (%p455) target = $region44
      $region43: #{_lambda_.10} parent=39 // pred_region
        %p458 = scmp.lt.s32.totalorder %s15, 5
        %s459 = scalar_select %p458, %s15, 5
        %s460 = smul.addr %s459, 2
        %s461 = scalar_lea.vmem %s3, %s460
      $region44: #{_lambda_.10} parent=39 // pred_fallthru
        _
    $region40: #{_lambda_.10} parent=5 // pred_fallthru
      _
  $region6: #{_lambda_.10} parent=0 // loop_footer
    %s13 = sadd.s32 1, %s9
  $region7: #{_lambda_.10} parent=0 // loop_footer_branch
    %8 = sbr.rel target = $region3
  $region8: #{_lambda_.10} parent=0 // loop_exit
    _

// kernel: _lambda_.11
$region0: #{_lambda_.11}
  #allocation0 [shape = 'u32[]', space=smem, size = 0x4, offset = 0x4, fixed_abs, tag = 'smem constant byte address 0x4 - core index']
  #allocation1 [shape = 'u32[144,128]{1,0:T(1,128)}', space=vmem, size = 0x12000, scoped, tag = 'internal scratch']
  #allocation2 [shape = 'f32[1,1]{1,0:T(1,128)S(1)}', space=vmem, size = 0x200, scoped, tag = 'scoped memory for _lambda_.11']
  %s0 = inlined_call_operand.vmem [shape: f32[6,4,32], index: 0, kind: input, shape index: {}]
  %s1 = inlined_call_operand.vmem [shape: f32[3,32,1], index: 1, kind: input, shape index: {}]
  %s2 = inlined_call_operand.<no memory space> [shape: f32[1,1], index: 2, kind: input, shape index: {}]
  %s3 = inlined_call_operand.vmem [shape: f32[6,2,1], index: 3, kind: output, shape index: {}]
  %s4 = sld [smem:[#allocation0]]
  $region45: #{_lambda_.11} parent=0
    _
  %s6 = ssub.s32 1, %s4
  %s7 = scalar_select 0, %s6, %s4
  %v8 = vstv %s2
  %9 = vst [vmem:[#allocation2] sm:$0x1] %v8
  loop: start=0, step=1, limit=8
  $region2: #{_lambda_.11} parent=0 // loop_pre_header
    _
  $region3: #{_lambda_.11} parent=0 // loop_header
    %s11 = sphi 0, %s15
    %p12 = scmp.ge.s32.totalorder %s11, 8
    %s21 = sphi 0, %s23
    %s24 = sphi 0, %s21
    %s25 = sphi 0, %s24
    %s41 = sphi 0, %s25
    %s45 = sphi 0, %s45
    %s47 = sphi 0, %s45
    %s48 = sphi 0, %s47
    %s62 = sphi 0, %s48
    %s66 = sphi 0, %s66
    %s68 = sphi 0, %s66
    %s69 = sphi 0, %s68
    %s83 = sphi 0, %s69
    %s89 = sphi 0, %s91
    %s92 = sphi 0, %s89
    %s93 = sphi 0, %s92
    %s109 = sphi 0, %s93
  $region4: #{_lambda_.11} parent=0 // loop_header_branch
    %14 = sbr.rel (%p12) target = $region8
  $region5: #{_lambda_.11} parent=0 // loop_body
    %s16 = ssub.s32 %s11, 1
    %s17 = ssub.s32 %s11, 2
    %s18 = sadd.s32 %s11, 1
    %s19 = ssub.s32 %s11, %s18
    %p20 = scmp.eq.s32.totalorder %s19, 0
    %s22 = sadd.s32 %s21, 1
    %s23 = scalar_select %p20, %s21, %s22
    %p26 = pneg %p20
    %p27 = scmp.eq.s32.totalorder %s11, 5
    %p28 = por %p26, %p27
    %p29 = scmp.ne.s32.totalorder %s21, %s24
    %p30 = scmp.eq.s32.totalorder %s11, 0
    %p31 = por %p29, %p30
    %p32 = scmp.ne.s32.totalorder %s21, %s24
    %p33 = scmp.eq.s32.totalorder %s16, 5
    %p34 = por %p32, %p33
    %p35 = scmp.ne.s32.totalorder %s24, %s25
    %p36 = scmp.eq.s32.totalorder %s16, 0
    %p37 = por %p35, %p36
    %p38 = scmp.ne.s32.totalorder %s24, %s25
    %p39 = scmp.eq.s32.totalorder %s17, 5
    %p40 = por %p38, %p39
    %p42 = scmp.ne.s32.totalorder %s25, %s41
    %p43 = scmp.eq.s32.totalorder %s17, 0
    %p44 = por %p42, %p43
    %s46 = sadd.s32 %s45, 1
    %p49 = scmp.eq.s32.totalorder %s11, 5
    %p50 = scmp.ne.s32.totalorder %s45, %s47
    %p51 = scmp.eq.s32.totalorder %s11, 0
    %p52 = por %p50, %p51
    %p53 = scmp.ne.s32.totalorder %s45, %s47
    %p54 = scmp.eq.s32.totalorder %s16, 5
    %p55 = por %p53, %p54
    %p56 = scmp.ne.s32.totalorder %s47, %s48
    %p57 = scmp.eq.s32.totalorder %s16, 0
    %p58 = por %p56, %p57
    %p59 = scmp.ne.s32.totalorder %s47, %s48
    %p60 = scmp.eq.s32.totalorder %s17, 5
    %p61 = por %p59, %p60
    %p63 = scmp.ne.s32.totalorder %s48, %s62
    %p64 = scmp.eq.s32.totalorder %s17, 0
    %p65 = por %p63, %p64
    %s67 = sadd.s32 %s66, 1
    %p70 = scmp.eq.s32.totalorder %s11, 5
    %p71 = scmp.ne.s32.totalorder %s66, %s68
    %p72 = scmp.eq.s32.totalorder %s11, 0
    %p73 = por %p71, %p72
    %p74 = scmp.ne.s32.totalorder %s66, %s68
    %p75 = scmp.eq.s32.totalorder %s16, 5
    %p76 = por %p74, %p75
    %p77 = scmp.ne.s32.totalorder %s68, %s69
    %p78 = scmp.eq.s32.totalorder %s16, 0
    %p79 = por %p77, %p78
    %p80 = scmp.ne.s32.totalorder %s68, %s69
    %p81 = scmp.eq.s32.totalorder %s17, 5
    %p82 = por %p80, %p81
    %p84 = scmp.ne.s32.totalorder %s69, %s83
    %p85 = scmp.eq.s32.totalorder %s17, 0
    %p86 = por %p84, %p85
    %s87 = ssub.s32 %s11, %s18
    %p88 = scmp.eq.s32.totalorder %s87, 0
    %s90 = sadd.s32 %s89, 1
    %s91 = scalar_select %p88, %s89, %s90
    %p94 = pneg %p88
    %p95 = scmp.eq.s32.totalorder %s11, 5
    %p96 = por %p94, %p95
    %p97 = scmp.ne.s32.totalorder %s89, %s92
    %p98 = scmp.eq.s32.totalorder %s11, 0
    %p99 = por %p97, %p98
    %p100 = scmp.ne.s32.totalorder %s89, %s92
    %p101 = scmp.eq.s32.totalorder %s16, 5
    %p102 = por %p100, %p101
    %p103 = scmp.ne.s32.totalorder %s92, %s93
    %p104 = scmp.eq.s32.totalorder %s16, 0
    %p105 = por %p103, %p104
    %p106 = scmp.ne.s32.totalorder %s92, %s93
    %p107 = scmp.eq.s32.totalorder %s17, 5
    %p108 = por %p106, %p107
    %p110 = scmp.ne.s32.totalorder %s93, %s109
    %p111 = scmp.eq.s32.totalorder %s17, 0
    %p112 = por %p110, %p111
    %p113 = scmp.le.s32.totalorder 1, %s11
    %p114 = scmp.lt.s32.totalorder %s11, 7
    %p115 = pnand %p113, %p114
    %p116 = pneg %p115
    // Predicated region
    $region9: #{_lambda_.11} parent=5 // pred_check
      _
    $region10: #{_lambda_.11} parent=5 // pred_check_branch
      %118 = sbr.rel (%p115) target = $region12
    $region11: #{_lambda_.11} parent=5 // pred_region
      %s119 = ssub.s32 %s11, 1
      // Predicated region
      $region13: #{_lambda_.11} parent=11 // pred_check
        %p120 = pneg %p58
      $region14: #{_lambda_.11} parent=11 // pred_check_branch
        %122 = sbr.rel (%p120) target = $region16
      $region15: #{_lambda_.11} parent=11 // pred_region
        _
      $region16: #{_lambda_.11} parent=11 // pred_fallthru
        _
      // Predicated region
      $region17: #{_lambda_.11} parent=11 // pred_check
        %p123 = pneg %p79
      $region18: #{_lambda_.11} parent=11 // pred_check_branch
        %125 = sbr.rel (%p123) target = $region20
      $region19: #{_lambda_.11} parent=11 // pred_region
        _
      $region20: #{_lambda_.11} parent=11 // pred_fallthru
        _
    $region12: #{_lambda_.11} parent=5 // pred_fallthru
      _
    %p126 = scmp.lt.s32.totalorder %s11, 6
    // Predicated region
    $region21: #{_lambda_.11} parent=5 // pred_check
      %p127 = pneg %p126
    $region22: #{_lambda_.11} parent=5 // pred_check_branch
      %129 = sbr.rel (%p127) target = $region24
    $region23: #{_lambda_.11} parent=5 // pred_region
      // Predicated region
      $region25: #{_lambda_.11} parent=23 // pred_check
        %p130 = pneg %p31
      $region26: #{_lambda_.11} parent=23 // pred_check_branch
        %132 = sbr.rel (%p130) target = $region28
      $region27: #{_lambda_.11} parent=23 // pred_region
        %p133 = scmp.lt.s32.totalorder %s11, 5
        %s134 = scalar_select %p133, %s11, 5
        %s135 = smul.addr %s134, 4
        %s136 = scalar_lea.vmem %s0, %s135
      $region28: #{_lambda_.11} parent=23 // pred_fallthru
        _
    $region24: #{_lambda_.11} parent=5 // pred_fallthru
      _
    %p137 = scmp.le.s32.totalorder 1, %s11
    %p138 = scmp.lt.s32.totalorder %s11, 7
    %p139 = pnand %p137, %p138
    %p140 = pneg %p139
    // Predicated region
    $region29: #{_lambda_.11} parent=5 // pred_check
      _
    $region30: #{_lambda_.11} parent=5 // pred_check_branch
      %142 = sbr.rel (%p139) target = $region32
    $region31: #{_lambda_.11} parent=5 // pred_region
      %s143 = ssub.s32 %s11, 1
      %p144 = scmp.lt.s32.totalorder %s16, 5
      %s145 = scalar_select %p144, %s16, 5
      %s146 = smul.addr %s145, 4
      %s147 = scalar_lea.vmem %s0, %s146
      %p148 = pneg %p37
      %p149 = pneg %p34
      %p150 = pneg %p58
      %p151 = pneg %p55
      %p152 = pneg %p79
      %p153 = pneg %p76
      %p154 = pneg %p105
      %p155 = pneg %p102
      %p156 = scmp.lt.s32.totalorder %s16, 5
      %s157 = scalar_select %p156, %s16, 5
      %s158 = smul.addr %s157, 2
      %s159 = scalar_lea.vmem %s3, %s158
      %p160 = scmp.lt.s32.totalorder %s16, 5
      %s161 = scalar_select %p160, %s16, 5
      %s162 = smul.addr %s161, 4
      %s163 = scalar_lea.vmem %s0, %s162
      %p164 = scmp.lt.s32.totalorder %s16, 5
      %s165 = scalar_select %p164, %s16, 5
      %s166 = smul.addr %s165, 2
      %s167 = scalar_lea.vmem %s3, %s166
      %v169 = vld [vmem:[%s163] sm:$0x3]
      %v170 = vpack.c.bf16 %v169, %v169
      %v171 = vld [vmem:[%s1] sm:$0xff]
      %v172 = vld [vmem:[%s1 + $0x8] sm:$0xff]
      %v173 = vld [vmem:[%s1 + $0x10] sm:$0xff]
      %v174 = vld [vmem:[%s1 + $0x18] sm:$0xff]
      %v175 = vpack.c.bf16 %v172, %v171
      %v176 = vpack.c.bf16 %v174, %v173
      %v177 = vld [vmem:[%s163 + $0x1] sm:$0x3]
      %v178 = vpack.c.bf16 %v177, %v177
      %s179 = scalar_lea.vmem %s1, 32
      %v180 = vld [vmem:[%s179] sm:$0xff]
      %v181 = vld [vmem:[%s179 + $0x8] sm:$0xff]
      %v182 = vld [vmem:[%s179 + $0x10] sm:$0xff]
      %v183 = vld [vmem:[%s179 + $0x18] sm:$0xff]
      %v184 = vpack.c.bf16 %v181, %v180
      %v185 = vpack.c.bf16 %v183, %v182
      %vm186 = vcmask 261120
      %v188 = vsel %vm186, %v178, 0
      %190 = vmatprep.subr.bf16.mxu0 0
      %191 = vmatpush1.bf16.msra.mxu0 %v184
      %192 = vmatprep.subr.bf16.mxu0 0
      %193 = vmatpush1.bf16.msra.mxu0 %v185
      %194 = vmatprep.subr.bf16.mxu0 0
      %195 = vmatpush1.bf16.msra.mxu0 0
      %196 = vmatprep.subr.bf16.mxu0 0
      %197 = vmatpush1.bf16.msra.mxu0 0
      %198 = vmatprep.subr.bf16.mxu0 0
      %199 = vmatpush1.bf16.msra.mxu0 0
      %200 = vmatprep.subr.bf16.mxu0 0
      %201 = vmatpush1.bf16.msra.mxu0 0
      %202 = vmatprep.subr.bf16.mxu0 0
      %203 = vmatpush1.bf16.msra.mxu0 0
      %204 = vmatprep.subr.bf16.mxu0 0
      %205 = vmatpush1.bf16.msra.mxu0 0
      %206 = vmatprep.subr.bf16.mxu0 0
      %207 = vmatpush1.bf16.msra.mxu0 0
      %208 = vmatprep.subr.bf16.mxu0 0
      %209 = vmatpush1.bf16.msra.mxu0 0
      %210 = vmatprep.subr.bf16.mxu0 0
      %211 = vmatpush1.bf16.msra.mxu0 0
      %212 = vmatprep.subr.bf16.mxu0 0
      %213 = vmatpush1.bf16.msra.mxu0 0
      %214 = vmatprep.subr.bf16.mxu0 0
      %215 = vmatpush1.bf16.msra.mxu0 0
      %216 = vmatprep.subr.bf16.mxu0 0
      %217 = vmatpush1.bf16.msra.mxu0 0
      %218 = vmatprep.subr.bf16.mxu0 0
      %219 = vmatpush1.bf16.msra.mxu0 0
      %220 = vmatprep.subr.bf16.mxu0 0
      %221 = vmatpush1.bf16.msra.mxu0 0
      %222 = vmatprep.mubr.bf16.mxu0 0
      %223 = vmatmul.mubr.bf16.gmra.mrb[0].mxu0 %v188
      %v224 = vpop.f32.mrb[0].mxu0
      %v225 = vadd.f32 0.0, %v224
      %v226 = vpop.f32.mrb[0].mxu0
      %v227 = vpop.f32.mrb[0].mxu0
      %v228 = vpop.f32.mrb[0].mxu0
      %229 = vdwg.mxu0
      %v231 = vsel %vm186, %v170, 0
      %233 = vmatprep.subr.bf16.mxu0 0
      %234 = vmatpush1.bf16.msra.mxu0 %v175
      %235 = vmatprep.subr.bf16.mxu0 0
      %236 = vmatpush1.bf16.msra.mxu0 %v176
      %237 = vmatprep.subr.bf16.mxu0 0
      %238 = vmatpush1.bf16.msra.mxu0 0
      %239 = vmatprep.subr.bf16.mxu0 0
      %240 = vmatpush1.bf16.msra.mxu0 0
      %241 = vmatprep.subr.bf16.mxu0 0
      %242 = vmatpush1.bf16.msra.mxu0 0
      %243 = vmatprep.subr.bf16.mxu0 0
      %244 = vmatpush1.bf16.msra.mxu0 0
      %245 = vmatprep.subr.bf16.mxu0 0
      %246 = vmatpush1.bf16.msra.mxu0 0
      %247 = vmatprep.subr.bf16.mxu0 0
      %248 = vmatpush1.bf16.msra.mxu0 0
      %249 = vmatprep.subr.bf16.mxu0 0
      %250 = vmatpush1.bf16.msra.mxu0 0
      %251 = vmatprep.subr.bf16.mxu0 0
      %252 = vmatpush1.bf16.msra.mxu0 0
      %253 = vmatprep.subr.bf16.mxu0 0
      %254 = vmatpush1.bf16.msra.mxu0 0
      %255 = vmatprep.subr.bf16.mxu0 0
      %256 = vmatpush1.bf16.msra.mxu0 0
      %257 = vmatprep.subr.bf16.mxu0 0
      %258 = vmatpush1.bf16.msra.mxu0 0
      %259 = vmatprep.subr.bf16.mxu0 0
      %260 = vmatpush1.bf16.msra.mxu0 0
      %261 = vmatprep.subr.bf16.mxu0 0
      %262 = vmatpush1.bf16.msra.mxu0 0
      %263 = vmatprep.subr.bf16.mxu0 0
      %264 = vmatpush1.bf16.msra.mxu0 0
      %265 = vmatprep.mubr.bf16.mxu0 0
      %266 = vmatmul.mubr.bf16.gmra.mrb[0].mxu0 %v231
      %v267 = vpop.f32.mrb[0].mxu0
      %v268 = vadd.f32 %v225, %v267
      %v269 = vpop.f32.mrb[0].mxu0
      %v270 = vpop.f32.mrb[0].mxu0
      %v271 = vpop.f32.mrb[0].mxu0
      %272 = vdwg.mxu0
      %v273 = vld [vmem:[%s163 + $0x2] sm:$0x3]
      %v274 = vpack.c.bf16 %v273, %v273
      %s275 = scalar_lea.vmem %s1, 64
      %v276 = vld [vmem:[%s275] sm:$0xff]
      %v277 = vld [vmem:[%s275 + $0x8] sm:$0xff]
      %v278 = vld [vmem:[%s275 + $0x10] sm:$0xff]
      %v279 = vld [vmem:[%s275 + $0x18] sm:$0xff]
      %v280 = vpack.c.bf16 %v277, %v276
      %v281 = vpack.c.bf16 %v279, %v278
      %v283 = vsel %vm186, %v274, 0
      %285 = vmatprep.subr.bf16.mxu0 0
      %286 = vmatpush1.bf16.msra.mxu0 %v280
      %287 = vmatprep.subr.bf16.mxu0 0
      %288 = vmatpush1.bf16.msra.mxu0 %v281
      %289 = vmatprep.subr.bf16.mxu0 0
      %290 = vmatpush1.bf16.msra.mxu0 0
      %291 = vmatprep.subr.bf16.mxu0 0
      %292 = vmatpush1.bf16.msra.mxu0 0
      %293 = vmatprep.subr.bf16.mxu0 0
      %294 = vmatpush1.bf16.msra.mxu0 0
      %295 = vmatprep.subr.bf16.mxu0 0
      %296 = vmatpush1.bf16.msra.mxu0 0
      %297 = vmatprep.subr.bf16.mxu0 0
      %298 = vmatpush1.bf16.msra.mxu0 0
      %299 = vmatprep.subr.bf16.mxu0 0
      %300 = vmatpush1.bf16.msra.mxu0 0
      %301 = vmatprep.subr.bf16.mxu0 0
      %302 = vmatpush1.bf16.msra.mxu0 0
      %303 = vmatprep.subr.bf16.mxu0 0
      %304 = vmatpush1.bf16.msra.mxu0 0
      %305 = vmatprep.subr.bf16.mxu0 0
      %306 = vmatpush1.bf16.msra.mxu0 0
      %307 = vmatprep.subr.bf16.mxu0 0
      %308 = vmatpush1.bf16.msra.mxu0 0
      %309 = vmatprep.subr.bf16.mxu0 0
      %310 = vmatpush1.bf16.msra.mxu0 0
      %311 = vmatprep.subr.bf16.mxu0 0
      %312 = vmatpush1.bf16.msra.mxu0 0
      %313 = vmatprep.subr.bf16.mxu0 0
      %314 = vmatpush1.bf16.msra.mxu0 0
      %315 = vmatprep.subr.bf16.mxu0 0
      %316 = vmatpush1.bf16.msra.mxu0 0
      %317 = vmatprep.mubr.bf16.mxu0 0
      %318 = vmatmul.mubr.bf16.gmra.mrb[0].mxu0 %v283
      %v319 = vpop.f32.mrb[0].mxu0
      %v320 = vadd.f32 0.0, %v319
      %v321 = vpop.f32.mrb[0].mxu0
      %v322 = vpop.f32.mrb[0].mxu0
      %v323 = vpop.f32.mrb[0].mxu0
      %324 = vdwg.mxu0
      %v325 = vadd.f32 %v268, %v320
      %v326 = vld [vmem:[#allocation2] sm:$0x1]
      %v328 = vlaneseq
      %v329 = vshrl.u32 %v328, 7
      %v330 = vsub.s32 0, %v329
      %v331 = vrot.slane %v326, %v330
      %v333 = vadd.f32 %v325, %v331
      %vm334 = vcmask 1024
      %335 = vst.msk [vmem:[%s167] sm:$0x3] %vm334, %v333
      %p336 = scmp.lt.s32.totalorder %s16, 5
      %s337 = scalar_select %p336, %s16, 5
      %s338 = smul.addr %s337, 2
      %s339 = scalar_lea.vmem %s3, %s338
      // Predicated region
      $region33: #{_lambda_.11} parent=31 // pred_check
        %p340 = pneg %p102
      $region34: #{_lambda_.11} parent=31 // pred_check_branch
        %342 = sbr.rel (%p340) target = $region36
      $region35: #{_lambda_.11} parent=31 // pred_region
        _
      $region36: #{_lambda_.11} parent=31 // pred_fallthru
        _
    $region32: #{_lambda_.11} parent=5 // pred_fallthru
      _
    %p343 = scmp.le.s32.totalorder 2, %s11
    // Predicated region
    $region37: #{_lambda_.11} parent=5 // pred_check
      %p344 = pneg %p343
    $region38: #{_lambda_.11} parent=5 // pred_check_branch
      %346 = sbr.rel (%p344) target = $region40
    $region39: #{_lambda_.11} parent=5 // pred_region
      %s347 = ssub.s32 %s11, 2
      // Predicated region
      $region41: #{_lambda_.11} parent=39 // pred_check
        %p348 = pneg %p108
      $region42: #{_lambda_.11} parent=39 // pred_check_branch
        %350 = sbr.rel (%p348) target = $region44
      $region43: #{_lambda_.11} parent=39 // pred_region
        %p351 = scmp.lt.s32.totalorder %s17, 5
        %s352 = scalar_select %p351, %s17, 5
        %s353 = smul.addr %s352, 2
        %s354 = scalar_lea.vmem %s3, %s353
      $region44: #{_lambda_.11} parent=39 // pred_fallthru
        _
    $region40: #{_lambda_.11} parent=5 // pred_fallthru
      _
  $region6: #{_lambda_.11} parent=0 // loop_footer
    %s15 = sadd.s32 1, %s11
  $region7: #{_lambda_.11} parent=0 // loop_footer_branch
    %10 = sbr.rel target = $region3
  $region8: #{_lambda_.11} parent=0 // loop_exit
    _

</llo_original>
